<compile_context>
chip_gen: v7x
topology: tpu7x:2x2x1
jax: 0.10.0
libtpu: 0.0.40
codegen_flags: <defaults>
</compile_context>

<pallas_src>
import numpy as np
import jax
import jax.numpy as jnp
from jax.experimental import pallas as pl
from jax.experimental.pallas import tpu as pltpu

RESSYMB_ORDER = "ACDEFGHIKLMNPQRSTVWYX"  # default input vocab (21 tokens)
ESM_RESTYPES = ['<cls>', '<pad>', '<eos>', '<unk>', 'L', 'A', 'G', 'V', 'S',
                'E', 'R', 'T', 'I', 'D', 'P', 'K', 'Q', 'N', 'F', 'Y', 'M',
                'H', 'W', 'C', 'X', 'B', 'U', 'Z', 'O', '.', '-', '<null_1>',
                '<mask>']

V_IN = len(RESSYMB_ORDER)    # 21
V_ESM = len(ESM_RESTYPES)    # 33
D = 128                      # synthetic embedding dim (ESM-1b uses 1280)
LANE = 128                   # lane-dense output width
PAD_IDX = 1                  # ESM '<pad>' token id

VMEM_LIMIT_BYTES = 40 * 1024 * 1024     # explicit scoped-VMEM limit (< 48 MiB)
_BLOCK_BUDGET_BYTES = 24 * 1024 * 1024  # target per-grid-step working set


def _cdiv(a, b):
    return -(-a // b)


def _round_up(x, m):
    return ((x + m - 1) // m) * m


def sequence_transform(restypes_in=RESSYMB_ORDER, restypes_tar=ESM_RESTYPES):
    """Exact port of the PyTorch sequence_transform (numpy glue)."""
    tm = np.zeros((len(restypes_in), len(restypes_tar)), dtype=np.float32)
    tm[-1, -1] = 1.0
    for i, tok in enumerate(restypes_in):
        tm[i, restypes_tar.index(tok)] = 1.0
    return jnp.asarray(tm)


def _pick_block_batch(L1):
    """Largest Bb (multiple of 16, floor 8) whose per-step VMEM footprint fits.

    Per-row accounting (bytes):
      idx block (R,1) int32: lane-padded to 128  -> 512, double-buffered
      grad out  (R,128) f32                      -> 512, double-buffered
      seg       (Bb,R) f32                       -> 4*Bb, double-buffered
      live f32/bf16 intermediates (xf, lp, s, ..)-> ~1536 headroom
    """
    def estimate(bb):
        rows = bb * L1
        per_row = 2 * 512 + 2 * 512 + 2 * 4 * bb + 1536
        return rows * per_row + (1 << 20)   # + resident weights / fit block
    for bb in (64, 48, 32, 16, 8):
        if estimate(bb) <= _BLOCK_BUDGET_BYTES:
            return bb
    return 8


def _fitness_grad_kernel(idx_ref, m_ref, gsel_ref, gproj_ref, seg_ref,
                         fit_ref, grad_ref):
    idx = idx_ref[...]                                    # (R, 1) int32
    R = idx.shape[0]

    # --- one-hot built in-kernel (lane-iota vs. the id column; VPU filler) ---
    viota = jax.lax.broadcasted_iota(jnp.int32, (R, V_ESM), 1)
    oh = viota == idx                                     # (R, V_ESM) bool
    xf = jnp.where(oh, jnp.float32(1.0), jnp.float32(0.0))
    xb = xf.astype(jnp.bfloat16)

    # --- synthetic fitness_cal trunk: tied-embedding logit head, x @ M ---
    logits = jnp.dot(xb, m_ref[...], preferred_element_type=jnp.float32)

    # stable softmax / log-softmax in f32 (s consistent with lp)
    zmax = jnp.max(logits, axis=-1, keepdims=True)
    z = logits - zmax
    ez = jnp.exp(z)
    sez = jnp.sum(ez, axis=-1, keepdims=True)
    lp = z - jnp.log(sez)                                 # log-softmax
    s = ez * pl.reciprocal(sez, approx=False)             # softmax

    # --- per-row pseudo-log-likelihood; masked (<pad>) rows excluded ---
    valid = jnp.where(idx != PAD_IDX, jnp.float32(1.0), jnp.float32(0.0))
    row_ll = jnp.sum(xf * lp, axis=-1, keepdims=True) * valid       # (R, 1)

    # per-sequence reduction: tiny N=1 f32 dot against the 0/1 segment matrix
    fit = jnp.dot(seg_ref[...], row_ll, preferred_element_type=jnp.float32)
    fit_ref[...] = jnp.broadcast_to(fit, fit_ref.shape)             # lane-dense

    # --- fused analytic grad wrt the one-hot input, projected to input vocab:
    #   (lp + (x - s) @ M^T) @ gsel == lp @ gsel + (x - s) @ (M^T @ gsel)
    grad = (jnp.dot(lp.astype(jnp.bfloat16), gsel_ref[...],
                    preferred_element_type=jnp.float32)
            + jnp.dot((xf - s).astype(jnp.bfloat16), gproj_ref[...],
                      preferred_element_type=jnp.float32))          # (R, 128)
    grad_ref[...] = grad.astype(grad_ref.dtype)


def fitness_grad(seq, mask, trans_mat, emb, emb_inv, grad_sele,
                 with_grad=True, with_padding=False):
    """Pallas implementation of FitnessGrad.forward (tensor-input path).

    seq:  (B, L) int32 indices into RESSYMB_ORDER
    mask: (B, L) {0,1} or None
    returns: fitness (B,), grad (B, L+1, V_IN-1)   [with_grad, not with_padding]
    """
    B, L = seq.shape
    L1 = L + 1
    if mask is None:
        mask = jnp.ones((B, L), dtype=jnp.int32)

    # --- seq = seq_trans_mat[seq].max(dim=-1).indices (first-max tie break) ---
    lut = jnp.argmax(trans_mat, axis=-1).astype(jnp.int32)        # (V_IN,)
    esm_idx = jnp.take(lut, seq)                                  # (B, L)
    esm_idx = jnp.where(mask == 0, jnp.int32(PAD_IDX), esm_idx)   # <pad> masked
    esm_idx = jnp.pad(esm_idx, ((0, 0), (1, 0)))                  # prepend <cls>=0

    # --- block batch from VMEM budget; grid >= 2 so both v7x TCs engage ---
    Bb = _pick_block_batch(L1)
    Bb = min(Bb, max(16, _round_up(_cdiv(B, 2), 16)))
    G = max(2, _cdiv(B, Bb))
    B_pad = G * Bb
    R = Bb * L1

    if B_pad != B:
        esm_idx = jnp.pad(esm_idx, ((0, B_pad - B), (0, 0)))
    idx_flat = esm_idx.reshape(B_pad * L1, 1).astype(jnp.int32)

    # --- batch-invariant constants, computed once outside the kernel ---
    gsel_pad = jnp.zeros((V_ESM, LANE), jnp.float32).at[:, :V_IN].set(grad_sele)
    M = jnp.dot(emb, emb_inv)                                     # (33, 33)
    gproj_pad = jnp.dot(M.T, gsel_pad)                            # (33, 128)
    seg = ((jnp.arange(R) // L1)[None, :] == jnp.arange(Bb)[:, None]
           ).astype(jnp.float32)                                  # (Bb, R) 0/1

    m_b = M.astype(jnp.bfloat16)
    gsel_b = gsel_pad.astype(jnp.bfloat16)
    gproj_b = gproj_pad.astype(jnp.bfloat16)

    fit, grad = pl.pallas_call(
        _fitness_grad_kernel,
        out_shape=(jax.ShapeDtypeStruct((B_pad, LANE), jnp.float32),
                   jax.ShapeDtypeStruct((B_pad * L1, LANE), jnp.float32)),
        grid=(G,),
        in_specs=[
            pl.BlockSpec((R, 1), lambda g: (g, 0)),           # token ids
            pl.BlockSpec((V_ESM, V_ESM), lambda g: (0, 0)),   # M        (resident)
            pl.BlockSpec((V_ESM, LANE), lambda g: (0, 0)),    # gsel     (resident)
            pl.BlockSpec((V_ESM, LANE), lambda g: (0, 0)),    # M^T@gsel (resident)
            pl.BlockSpec((Bb, R), lambda g: (0, 0)),          # segment  (resident)
        ],
        out_specs=(
            pl.BlockSpec((Bb, LANE), lambda g: (g, 0)),       # fitness (lane-dense)
            pl.BlockSpec((R, LANE), lambda g: (g, 0)),        # grad    (lane-dense)
        ),
        compiler_params=pltpu.CompilerParams(
            dimension_semantics=("parallel",),
            vmem_limit_bytes=VMEM_LIMIT_BYTES),
    )(idx_flat, m_b, gsel_b, gproj_b, seg)

    fitness = fit[:B, 0]
    grad = grad.reshape(B_pad, L1, LANE)[:B, :, :V_IN]
    if with_grad and not with_padding:
        grad = grad[:, :, :-1]          # drop the last input-vocab column ('X')
    return fitness, grad


if __name__ == "__main__":
    key = jax.random.PRNGKey(0)
    k_seq, k_emb = jax.random.split(key, 2)

    B, L = 2, 8
    seq = jax.random.randint(k_seq, (B, L), 0, V_IN, dtype=jnp.int32)
    mask = jnp.ones((B, L), dtype=jnp.int32).at[:, -2:].set(0)

    # deterministic synthetic parameters (shapes per the module's __init__)
    trans_mat = sequence_transform()                       # (21, 33)
    emb = jax.random.normal(k_emb, (V_ESM, D), dtype=jnp.float32) * 0.02
    emb_inv = emb.T                                        # tied output head
    grad_sele = trans_mat.T                                # (33, 21)

    fitness, grad = fitness_grad(seq, mask, trans_mat, emb, emb_inv, grad_sele)
    jax.block_until_ready((fitness, grad))

    assert fitness.shape == (B,)
    assert grad.shape == (B, L + 1, V_IN - 1)
    assert bool(jnp.all(jnp.isfinite(fitness))) and bool(jnp.all(jnp.isfinite(grad)))
    print("KERNEL_OK")
</pallas_src>

<mosaic_0001>
module attributes {stable_mosaic.version = 11 : i64} {
  func.func @_fitness_grad_kernel(%arg0: i32, %arg1: memref<144x1xi32, #tpu.memory_space<vmem>>, %arg2: memref<33x33xbf16, #tpu.memory_space<vmem>>, %arg3: memref<33x128xbf16, #tpu.memory_space<vmem>>, %arg4: memref<33x128xbf16, #tpu.memory_space<vmem>>, %arg5: memref<16x144xf32, #tpu.memory_space<vmem>>, %arg6: memref<16x128xf32, #tpu.memory_space<vmem>>, %arg7: memref<144x128xf32, #tpu.memory_space<vmem>>) attributes {dimension_semantics = [#tpu.dimension_semantics<parallel>], iteration_bounds = array<i64: 2>, scalar_prefetch = 0 : i64, scratch_operands = 0 : i64, tpu.core_type = #tpu.core_type<tc>, window_params = [{transform_indices = @transform_0, window_bounds = array<i64: 144, 1>}, {pipeline_mode = #tpu.pipeline_mode<synchronous>, transform_indices = @transform_1, window_bounds = array<i64: 33, 33>}, {pipeline_mode = #tpu.pipeline_mode<synchronous>, transform_indices = @transform_2, window_bounds = array<i64: 33, 128>}, {pipeline_mode = #tpu.pipeline_mode<synchronous>, transform_indices = @transform_3, window_bounds = array<i64: 33, 128>}, {pipeline_mode = #tpu.pipeline_mode<synchronous>, transform_indices = @transform_4, window_bounds = array<i64: 16, 144>}, {transform_indices = @transform_5, window_bounds = array<i64: 16, 128>}, {transform_indices = @transform_6, window_bounds = array<i64: 144, 128>}]} {
    %c0 = arith.constant 0 : index
    %c0_0 = arith.constant 0 : index
    %0 = vector.load %arg1[%c0, %c0_0] : memref<144x1xi32, #tpu.memory_space<vmem>>, vector<144x1xi32>
    %1 = tpu.iota {dimensions = array<i32: 1>} : vector<144x33xi32>
    %2 = vector.broadcast %0 : vector<144x1xi32> to vector<144x33xi32>
    %3 = arith.cmpi eq, %1, %2 : vector<144x33xi32>
    %cst = arith.constant 1.000000e+00 : f32
    %cst_1 = arith.constant 0.000000e+00 : f32
    %4 = vector.broadcast %cst : f32 to vector<144x33xf32>
    %5 = vector.broadcast %cst_1 : f32 to vector<144x33xf32>
    %6 = arith.select %3, %4, %5 : vector<144x33xi1>, vector<144x33xf32>
    %7 = arith.truncf %6 : vector<144x33xf32> to vector<144x33xbf16>
    %c0_2 = arith.constant 0 : index
    %c0_3 = arith.constant 0 : index
    %8 = vector.load %arg2[%c0_2, %c0_3] : memref<33x33xbf16, #tpu.memory_space<vmem>>, vector<33x33xbf16>
    %cst_4 = arith.constant dense<0.000000e+00> : vector<144x33xf32>
    %9 = tpu.matmul %7, %8, %cst_4 {dimension_numbers = #tpu.dot_dimension_numbers<[1], [0], [0], [1], [0, 0, 1, 1], [], []>} : vector<144x33xbf16>, vector<33x33xbf16>, vector<144x33xf32> -> vector<144x33xf32>
    %cst_5 = arith.constant dense<0xFF800000> : vector<144xf32>
    %10 = vector.multi_reduction <maximumf>, %9, %cst_5 [1] : vector<144x33xf32> to vector<144xf32>
    %11 = vector.shape_cast %10 : vector<144xf32> to vector<144x1xf32>
    %12 = vector.broadcast %11 : vector<144x1xf32> to vector<144x33xf32>
    %13 = arith.subf %9, %12 : vector<144x33xf32>
    %14 = math.exp %13 : vector<144x33xf32>
    %cst_6 = arith.constant dense<0.000000e+00> : vector<144xf32>
    %15 = vector.multi_reduction <add>, %14, %cst_6 [1] : vector<144x33xf32> to vector<144xf32>
    %16 = vector.shape_cast %15 : vector<144xf32> to vector<144x1xf32>
    %17 = math.log %16 : vector<144x1xf32>
    %18 = vector.broadcast %17 : vector<144x1xf32> to vector<144x33xf32>
    %19 = arith.subf %13, %18 : vector<144x33xf32>
    %20 = tpu.reciprocal %16 : vector<144x1xf32> -> vector<144x1xf32>
    %21 = vector.broadcast %20 : vector<144x1xf32> to vector<144x33xf32>
    %22 = arith.mulf %14, %21 : vector<144x33xf32>
    %c1_i32 = arith.constant 1 : i32
    %23 = vector.broadcast %c1_i32 : i32 to vector<144x1xi32>
    %24 = arith.cmpi ne, %0, %23 : vector<144x1xi32>
    %cst_7 = arith.constant 1.000000e+00 : f32
    %cst_8 = arith.constant 0.000000e+00 : f32
    %25 = vector.broadcast %cst_7 : f32 to vector<144x1xf32>
    %26 = vector.broadcast %cst_8 : f32 to vector<144x1xf32>
    %27 = arith.select %24, %25, %26 : vector<144x1xi1>, vector<144x1xf32>
    %28 = arith.mulf %6, %19 : vector<144x33xf32>
    %cst_9 = arith.constant dense<0.000000e+00> : vector<144xf32>
    %29 = vector.multi_reduction <add>, %28, %cst_9 [1] : vector<144x33xf32> to vector<144xf32>
    %30 = vector.shape_cast %29 : vector<144xf32> to vector<144x1xf32>
    %31 = arith.mulf %30, %27 : vector<144x1xf32>
    %c0_10 = arith.constant 0 : index
    %c0_11 = arith.constant 0 : index
    %32 = vector.load %arg5[%c0_10, %c0_11] : memref<16x144xf32, #tpu.memory_space<vmem>>, vector<16x144xf32>
    %cst_12 = arith.constant dense<0.000000e+00> : vector<16x1xf32>
    %33 = tpu.matmul %32, %31, %cst_12 {dimension_numbers = #tpu.dot_dimension_numbers<[1], [0], [0], [1], [0, 0, 1, 1], [], []>} : vector<16x144xf32>, vector<144x1xf32>, vector<16x1xf32> -> vector<16x1xf32>
    %34 = vector.shape_cast %33 : vector<16x1xf32> to vector<16x1xf32>
    %35 = vector.broadcast %34 : vector<16x1xf32> to vector<16x128xf32>
    %c0_13 = arith.constant 0 : index
    %c0_14 = arith.constant 0 : index
    %36 = vector.load %arg6[%c0_13, %c0_14] : memref<16x128xf32, #tpu.memory_space<vmem>>, vector<16x128xf32>
    tpu.vector_store %arg6[%c0_13, %c0_14], %35 {strides = array<i32>} : memref<16x128xf32, #tpu.memory_space<vmem>>, vector<16x128xf32>,
    %37 = arith.truncf %19 : vector<144x33xf32> to vector<144x33xbf16>
    %c0_15 = arith.constant 0 : index
    %c0_16 = arith.constant 0 : index
    %38 = vector.load %arg3[%c0_15, %c0_16] : memref<33x128xbf16, #tpu.memory_space<vmem>>, vector<33x128xbf16>
    %cst_17 = arith.constant dense<0.000000e+00> : vector<144x128xf32>
    %39 = tpu.matmul %37, %38, %cst_17 {dimension_numbers = #tpu.dot_dimension_numbers<[1], [0], [0], [1], [0, 0, 1, 1], [], []>} : vector<144x33xbf16>, vector<33x128xbf16>, vector<144x128xf32> -> vector<144x128xf32>
    %40 = arith.subf %6, %22 : vector<144x33xf32>
    %41 = arith.truncf %40 : vector<144x33xf32> to vector<144x33xbf16>
    %c0_18 = arith.constant 0 : index
    %c0_19 = arith.constant 0 : index
    %42 = vector.load %arg4[%c0_18, %c0_19] : memref<33x128xbf16, #tpu.memory_space<vmem>>, vector<33x128xbf16>
    %cst_20 = arith.constant dense<0.000000e+00> : vector<144x128xf32>
    %43 = tpu.matmul %41, %42, %cst_20 {dimension_numbers = #tpu.dot_dimension_numbers<[1], [0], [0], [1], [0, 0, 1, 1], [], []>} : vector<144x33xbf16>, vector<33x128xbf16>, vector<144x128xf32> -> vector<144x128xf32>
    %44 = arith.addf %39, %43 : vector<144x128xf32>
    %c0_21 = arith.constant 0 : index
    %c0_22 = arith.constant 0 : index
    %45 = vector.load %arg7[%c0_21, %c0_22] : memref<144x128xf32, #tpu.memory_space<vmem>>, vector<144x128xf32>
    tpu.vector_store %arg7[%c0_21, %c0_22], %44 {strides = array<i32>} : memref<144x128xf32, #tpu.memory_space<vmem>>, vector<144x128xf32>,
    return
  }
  func.func @transform_0(%arg0: i32) -> (i32, i32) {
    %c0_i32 = arith.constant 0 : i32
    %c0_i32_0 = arith.constant 0 : i32
    return %arg0, %c0_i32 : i32, i32
  }
  func.func @transform_1(%arg0: i32) -> (i32, i32) {
    %c0_i32 = arith.constant 0 : i32
    %c0_i32_0 = arith.constant 0 : i32
    %c0_i32_1 = arith.constant 0 : i32
    return %c0_i32, %c0_i32_0 : i32, i32
  }
  func.func @transform_2(%arg0: i32) -> (i32, i32) {
    %c0_i32 = arith.constant 0 : i32
    %c0_i32_0 = arith.constant 0 : i32
    %c0_i32_1 = arith.constant 0 : i32
    return %c0_i32, %c0_i32_0 : i32, i32
  }
  func.func @transform_3(%arg0: i32) -> (i32, i32) {
    %c0_i32 = arith.constant 0 : i32
    %c0_i32_0 = arith.constant 0 : i32
    %c0_i32_1 = arith.constant 0 : i32
    return %c0_i32, %c0_i32_0 : i32, i32
  }
  func.func @transform_4(%arg0: i32) -> (i32, i32) {
    %c0_i32 = arith.constant 0 : i32
    %c0_i32_0 = arith.constant 0 : i32
    %c0_i32_1 = arith.constant 0 : i32
    return %c0_i32, %c0_i32_0 : i32, i32
  }
  func.func @transform_5(%arg0: i32) -> (i32, i32) {
    %c0_i32 = arith.constant 0 : i32
    %c0_i32_0 = arith.constant 0 : i32
    return %arg0, %c0_i32 : i32, i32
  }
  func.func @transform_6(%arg0: i32) -> (i32, i32) {
    %c0_i32 = arith.constant 0 : i32
    %c0_i32_0 = arith.constant 0 : i32
    return %arg0, %c0_i32 : i32, i32
  }
}

</mosaic_0001>

<llo_original>
// kernel: tpu_custom_call.1
$region0: #{tpu_custom_call.1}
  #allocation0 [shape = 'u32[]', space=smem, size = 0x4, offset = 0x4, fixed_abs, tag = 'smem constant byte address 0x4 - core index']
  #allocation1 [shape = 'u32[144,128]{1,0:T(1,128)}', space=vmem, size = 0x12000, scoped, tag = 'internal scratch']
  %s0 = inlined_call_operand.vmem [shape: s32[288,1], index: 0, kind: input, shape index: {}]
  %s1 = inlined_call_operand.vmem [shape: bf16[33,33], index: 1, kind: input, shape index: {}]
  %s2 = inlined_call_operand.vmem [shape: bf16[33,128], index: 2, kind: input, shape index: {}]
  %s3 = inlined_call_operand.vmem [shape: bf16[33,128], index: 3, kind: input, shape index: {}]
  %s4 = inlined_call_operand.vmem [shape: f32[16,144], index: 4, kind: input, shape index: {}]
  %s5 = inlined_call_operand.hbm [shape: f32[32,128], index: 5, kind: output, shape index: {0}]
  %s6 = inlined_call_operand.hbm [shape: f32[288,128], index: 6, kind: output, shape index: {1}]
  %7 = xla_tuple %s5, %s6
  %s8 = sld [smem:[#allocation0]]
  $region61: #{tpu_custom_call.1} parent=0
    _
  %s10 = ssub.s32 1, %s8
  %s11 = scalar_select 0, %s10, %s8
  $region1: #{tpu_custom_call.1} parent=0
    #allocation2 [shape = 'u8[16384]{0}', space=vmem, size = 0x4000, scoped, tag = 'output window, operand 0']
    #allocation3 [shape = 's32[2]{0}', space=sflag, size = 0x8, scoped, tag = 'scoped memory for tpu_custom_call.1']
    #allocation4 [shape = 'u8[147456]{0}', space=vmem, size = 0x24000, scoped, tag = 'output window, operand 1']
    #allocation5 [shape = 's32[2]{0}', space=sflag, size = 0x8, scoped, tag = 'scoped memory for tpu_custom_call.1']
    %12 = vsyncpa [#allocation3], 0
    %s13 = scalar_lea.sflag [#allocation3], 1
    %14 = vsyncpa %s13, 0
    %15 = vsyncpa [#allocation5], 0
    %s16 = scalar_lea.sflag [#allocation5], 1
    %17 = vsyncpa %s16, 0
    loop: start=0, step=1, limit=4
    $region2: #{tpu_custom_call.1} parent=1 // loop_pre_header
      _
    $region3: #{tpu_custom_call.1} parent=1 // loop_header
      %s19 = sphi 0, %s23
      %p20 = scmp.ge.s32.totalorder %s19, 4
      %s29 = sphi 0, %s31
      %s32 = sphi 0, %s29
      %s33 = sphi 0, %s32
      %s49 = sphi 0, %s33
      %s53 = sphi 0, %s53
      %s55 = sphi 0, %s53
      %s56 = sphi 0, %s55
      %s70 = sphi 0, %s56
      %s74 = sphi 0, %s74
      %s76 = sphi 0, %s74
      %s77 = sphi 0, %s76
      %s91 = sphi 0, %s77
      %s95 = sphi 0, %s95
      %s97 = sphi 0, %s95
      %s98 = sphi 0, %s97
      %s112 = sphi 0, %s98
      %s116 = sphi 0, %s116
      %s118 = sphi 0, %s116
      %s119 = sphi 0, %s118
      %s133 = sphi 0, %s119
      %s139 = sphi 0, %s141
      %s142 = sphi 0, %s139
      %s143 = sphi 0, %s142
      %s159 = sphi 0, %s143
      %s165 = sphi 0, %s167
      %s168 = sphi 0, %s165
      %s169 = sphi 0, %s168
      %s185 = sphi 0, %s169
    $region4: #{tpu_custom_call.1} parent=1 // loop_header_branch
      %22 = sbr.rel (%p20) target = $region8
    $region5: #{tpu_custom_call.1} parent=1 // loop_body
      %s24 = ssub.s32 %s19, 1
      %s25 = ssub.s32 %s19, 2
      %s26 = sadd.s32 %s19, 1
      %s27 = ssub.s32 %s19, %s26
      %p28 = scmp.eq.s32.totalorder %s27, 0
      %s30 = sadd.s32 %s29, 1
      %s31 = scalar_select %p28, %s29, %s30
      %p34 = pneg %p28
      %p35 = scmp.eq.s32.totalorder %s19, 1
      %p36 = por %p34, %p35
      %p37 = scmp.ne.s32.totalorder %s29, %s32
      %p38 = scmp.eq.s32.totalorder %s19, 0
      %p39 = por %p37, %p38
      %p40 = scmp.ne.s32.totalorder %s29, %s32
      %p41 = scmp.eq.s32.totalorder %s24, 1
      %p42 = por %p40, %p41
      %p43 = scmp.ne.s32.totalorder %s32, %s33
      %p44 = scmp.eq.s32.totalorder %s24, 0
      %p45 = por %p43, %p44
      %p46 = scmp.ne.s32.totalorder %s32, %s33
      %p47 = scmp.eq.s32.totalorder %s25, 1
      %p48 = por %p46, %p47
      %p50 = scmp.ne.s32.totalorder %s33, %s49
      %p51 = scmp.eq.s32.totalorder %s25, 0
      %p52 = por %p50, %p51
      %s54 = sadd.s32 %s53, 1
      %p57 = scmp.eq.s32.totalorder %s19, 1
      %p58 = scmp.ne.s32.totalorder %s53, %s55
      %p59 = scmp.eq.s32.totalorder %s19, 0
      %p60 = por %p58, %p59
      %p61 = scmp.ne.s32.totalorder %s53, %s55
      %p62 = scmp.eq.s32.totalorder %s24, 1
      %p63 = por %p61, %p62
      %p64 = scmp.ne.s32.totalorder %s55, %s56
      %p65 = scmp.eq.s32.totalorder %s24, 0
      %p66 = por %p64, %p65
      %p67 = scmp.ne.s32.totalorder %s55, %s56
      %p68 = scmp.eq.s32.totalorder %s25, 1
      %p69 = por %p67, %p68
      %p71 = scmp.ne.s32.totalorder %s56, %s70
      %p72 = scmp.eq.s32.totalorder %s25, 0
      %p73 = por %p71, %p72
      %s75 = sadd.s32 %s74, 1
      %p78 = scmp.eq.s32.totalorder %s19, 1
      %p79 = scmp.ne.s32.totalorder %s74, %s76
      %p80 = scmp.eq.s32.totalorder %s19, 0
      %p81 = por %p79, %p80
      %p82 = scmp.ne.s32.totalorder %s74, %s76
      %p83 = scmp.eq.s32.totalorder %s24, 1
      %p84 = por %p82, %p83
      %p85 = scmp.ne.s32.totalorder %s76, %s77
      %p86 = scmp.eq.s32.totalorder %s24, 0
      %p87 = por %p85, %p86
      %p88 = scmp.ne.s32.totalorder %s76, %s77
      %p89 = scmp.eq.s32.totalorder %s25, 1
      %p90 = por %p88, %p89
      %p92 = scmp.ne.s32.totalorder %s77, %s91
      %p93 = scmp.eq.s32.totalorder %s25, 0
      %p94 = por %p92, %p93
      %s96 = sadd.s32 %s95, 1
      %p99 = scmp.eq.s32.totalorder %s19, 1
      %p100 = scmp.ne.s32.totalorder %s95, %s97
      %p101 = scmp.eq.s32.totalorder %s19, 0
      %p102 = por %p100, %p101
      %p103 = scmp.ne.s32.totalorder %s95, %s97
      %p104 = scmp.eq.s32.totalorder %s24, 1
      %p105 = por %p103, %p104
      %p106 = scmp.ne.s32.totalorder %s97, %s98
      %p107 = scmp.eq.s32.totalorder %s24, 0
      %p108 = por %p106, %p107
      %p109 = scmp.ne.s32.totalorder %s97, %s98
      %p110 = scmp.eq.s32.totalorder %s25, 1
      %p111 = por %p109, %p110
      %p113 = scmp.ne.s32.totalorder %s98, %s112
      %p114 = scmp.eq.s32.totalorder %s25, 0
      %p115 = por %p113, %p114
      %s117 = sadd.s32 %s116, 1
      %p120 = scmp.eq.s32.totalorder %s19, 1
      %p121 = scmp.ne.s32.totalorder %s116, %s118
      %p122 = scmp.eq.s32.totalorder %s19, 0
      %p123 = por %p121, %p122
      %p124 = scmp.ne.s32.totalorder %s116, %s118
      %p125 = scmp.eq.s32.totalorder %s24, 1
      %p126 = por %p124, %p125
      %p127 = scmp.ne.s32.totalorder %s118, %s119
      %p128 = scmp.eq.s32.totalorder %s24, 0
      %p129 = por %p127, %p128
      %p130 = scmp.ne.s32.totalorder %s118, %s119
      %p131 = scmp.eq.s32.totalorder %s25, 1
      %p132 = por %p130, %p131
      %p134 = scmp.ne.s32.totalorder %s119, %s133
      %p135 = scmp.eq.s32.totalorder %s25, 0
      %p136 = por %p134, %p135
      %s137 = ssub.s32 %s19, %s26
      %p138 = scmp.eq.s32.totalorder %s137, 0
      %s140 = sadd.s32 %s139, 1
      %s141 = scalar_select %p138, %s139, %s140
      %p144 = pneg %p138
      %p145 = scmp.eq.s32.totalorder %s19, 1
      %p146 = por %p144, %p145
      %p147 = scmp.ne.s32.totalorder %s139, %s142
      %p148 = scmp.eq.s32.totalorder %s19, 0
      %p149 = por %p147, %p148
      %p150 = scmp.ne.s32.totalorder %s139, %s142
      %p151 = scmp.eq.s32.totalorder %s24, 1
      %p152 = por %p150, %p151
      %p153 = scmp.ne.s32.totalorder %s142, %s143
      %p154 = scmp.eq.s32.totalorder %s24, 0
      %p155 = por %p153, %p154
      %p156 = scmp.ne.s32.totalorder %s142, %s143
      %p157 = scmp.eq.s32.totalorder %s25, 1
      %p158 = por %p156, %p157
      %p160 = scmp.ne.s32.totalorder %s143, %s159
      %p161 = scmp.eq.s32.totalorder %s25, 0
      %p162 = por %p160, %p161
      %s163 = ssub.s32 %s19, %s26
      %p164 = scmp.eq.s32.totalorder %s163, 0
      %s166 = sadd.s32 %s165, 1
      %s167 = scalar_select %p164, %s165, %s166
      %p170 = pneg %p164
      %p171 = scmp.eq.s32.totalorder %s19, 1
      %p172 = por %p170, %p171
      %p173 = scmp.ne.s32.totalorder %s165, %s168
      %p174 = scmp.eq.s32.totalorder %s19, 0
      %p175 = por %p173, %p174
      %p176 = scmp.ne.s32.totalorder %s165, %s168
      %p177 = scmp.eq.s32.totalorder %s24, 1
      %p178 = por %p176, %p177
      %p179 = scmp.ne.s32.totalorder %s168, %s169
      %p180 = scmp.eq.s32.totalorder %s24, 0
      %p181 = por %p179, %p180
      %p182 = scmp.ne.s32.totalorder %s168, %s169
      %p183 = scmp.eq.s32.totalorder %s25, 1
      %p184 = por %p182, %p183
      %p186 = scmp.ne.s32.totalorder %s169, %s185
      %p187 = scmp.eq.s32.totalorder %s25, 0
      %p188 = por %p186, %p187
      %p189 = scmp.le.s32.totalorder 1, %s19
      %p190 = scmp.lt.s32.totalorder %s19, 3
      %p191 = pnand %p189, %p190
      %p192 = pneg %p191
      // Predicated region
      $region9: #{tpu_custom_call.1} parent=5 // pred_check
        _
      $region10: #{tpu_custom_call.1} parent=5 // pred_check_branch
        %194 = sbr.rel (%p191) target = $region12
      $region11: #{tpu_custom_call.1} parent=5 // pred_region
        %s195 = ssub.s32 %s19, 1
        // Predicated region
        $region13: #{tpu_custom_call.1} parent=11 // pred_check
          %p196 = pneg %p66
        $region14: #{tpu_custom_call.1} parent=11 // pred_check_branch
          %198 = sbr.rel (%p196) target = $region16
        $region15: #{tpu_custom_call.1} parent=11 // pred_region
          _
        $region16: #{tpu_custom_call.1} parent=11 // pred_fallthru
          _
        // Predicated region
        $region17: #{tpu_custom_call.1} parent=11 // pred_check
          %p199 = pneg %p87
        $region18: #{tpu_custom_call.1} parent=11 // pred_check_branch
          %201 = sbr.rel (%p199) target = $region20
        $region19: #{tpu_custom_call.1} parent=11 // pred_region
          _
        $region20: #{tpu_custom_call.1} parent=11 // pred_fallthru
          _
        // Predicated region
        $region21: #{tpu_custom_call.1} parent=11 // pred_check
          %p202 = pneg %p108
        $region22: #{tpu_custom_call.1} parent=11 // pred_check_branch
          %204 = sbr.rel (%p202) target = $region24
        $region23: #{tpu_custom_call.1} parent=11 // pred_region
          _
        $region24: #{tpu_custom_call.1} parent=11 // pred_fallthru
          _
        // Predicated region
        $region25: #{tpu_custom_call.1} parent=11 // pred_check
          %p205 = pneg %p129
        $region26: #{tpu_custom_call.1} parent=11 // pred_check_branch
          %207 = sbr.rel (%p205) target = $region28
        $region27: #{tpu_custom_call.1} parent=11 // pred_region
          _
        $region28: #{tpu_custom_call.1} parent=11 // pred_fallthru
          _
      $region12: #{tpu_custom_call.1} parent=5 // pred_fallthru
        _
      %p208 = scmp.lt.s32.totalorder %s19, 2
      // Predicated region
      $region29: #{tpu_custom_call.1} parent=5 // pred_check
        %p209 = pneg %p208
      $region30: #{tpu_custom_call.1} parent=5 // pred_check_branch
        %211 = sbr.rel (%p209) target = $region32
      $region31: #{tpu_custom_call.1} parent=5 // pred_region
        // Predicated region
        $region33: #{tpu_custom_call.1} parent=31 // pred_check
          %p212 = pneg %p39
        $region34: #{tpu_custom_call.1} parent=31 // pred_check_branch
          %214 = sbr.rel (%p212) target = $region36
        $region35: #{tpu_custom_call.1} parent=31 // pred_region
          %s215 = smul.u32 18, %s19
          %p216 = scmp.lt.s32.totalorder %s215, 35
          %s217 = scalar_select %p216, %s215, 35
          %s218 = smul.addr %s217, 8
          %s219 = scalar_lea.vmem %s0, %s218
          %s220 = smul.u32 18, %s19
        $region36: #{tpu_custom_call.1} parent=31 // pred_fallthru
          _
      $region32: #{tpu_custom_call.1} parent=5 // pred_fallthru
        _
      %p221 = scmp.le.s32.totalorder 1, %s19
      %p222 = scmp.lt.s32.totalorder %s19, 3
      %p223 = pnand %p221, %p222
      %p224 = pneg %p223
      // Predicated region
      $region37: #{tpu_custom_call.1} parent=5 // pred_check
        _
      $region38: #{tpu_custom_call.1} parent=5 // pred_check_branch
        %226 = sbr.rel (%p223) target = $region40
      $region39: #{tpu_custom_call.1} parent=5 // pred_region
        %s227 = ssub.s32 %s19, 1
        %s228 = smul.u32 18, %s24
        %p229 = scmp.lt.s32.totalorder %s228, 35
        %s230 = scalar_select %p229, %s228, 35
        %s231 = smul.addr %s230, 8
        %s232 = scalar_lea.vmem %s0, %s231
        %p233 = pneg %p45
        %p234 = pneg %p42
        %p235 = pneg %p66
        %p236 = pneg %p63
        %p237 = pneg %p87
        %p238 = pneg %p84
        %p239 = pneg %p108
        %p240 = pneg %p105
        %p241 = pneg %p129
        %p242 = pneg %p126
        %p243 = pneg %p155
        %p244 = pneg %p152
        %s245 = sand.u32 %s142, 1
        %s246 = scalar_lea.sflag [#allocation3], %s245
        %s247 = sand.u32 %s142, 1
        %s248 = smul.addr %s247, 16
        %s249 = scalar_lea.vmem [#allocation2], %s248
        %p250 = pneg %p181
        %p251 = pneg %p178
        %s252 = sand.u32 %s168, 1
        %s253 = scalar_lea.sflag [#allocation5], %s252
        %s254 = sand.u32 %s168, 1
        %s255 = smul.addr %s254, 144
        %s256 = scalar_lea.vmem [#allocation4], %s255
        %s257 = smul.u32 18, %s24
        %p258 = scmp.lt.s32.totalorder %s257, 35
        %s259 = scalar_select %p258, %s257, 35
        %s260 = smul.addr %s259, 8
        %s261 = scalar_lea.vmem %s0, %s260
        %s262 = smul.u32 18, %s24
        %s263 = smul.u32 2, %s24
        %s264 = smul.u32 18, %s24
        %v266 = vld [vmem:[%s261] sm:$0xff]
        %v267 = vld [vmem:[%s261 + $0x8] sm:$0xff]
        %v268 = vld [vmem:[%s261 + $0x10] sm:$0xff]
        %v269 = vld [vmem:[%s261 + $0x18] sm:$0xff]
        %v270 = vld [vmem:[%s261 + $0x20] sm:$0xff]
        %v271 = vld [vmem:[%s261 + $0x28] sm:$0xff]
        %v272 = vld [vmem:[%s261 + $0x30] sm:$0xff]
        %v273 = vld [vmem:[%s261 + $0x38] sm:$0xff]
        %v274 = vld [vmem:[%s261 + $0x40] sm:$0xff]
        %v275 = vld [vmem:[%s261 + $0x48] sm:$0xff]
        %v276 = vld [vmem:[%s261 + $0x50] sm:$0xff]
        %v277 = vld [vmem:[%s261 + $0x58] sm:$0xff]
        %v278 = vld [vmem:[%s261 + $0x60] sm:$0xff]
        %v279 = vld [vmem:[%s261 + $0x68] sm:$0xff]
        %v280 = vld [vmem:[%s261 + $0x70] sm:$0xff]
        %v281 = vld [vmem:[%s261 + $0x78] sm:$0xff]
        %v282 = vld [vmem:[%s261 + $0x80] sm:$0xff]
        %v283 = vld [vmem:[%s261 + $0x88] sm:$0xff]
        %v284 = vlaneseq
        %v285 = vand.u32 %v284, 127
        %286 = vset.pattern.permute.xlu0 0
        %287 = vperm.xlu0 %286, %v266
        %v288 = vpop.permute.xlu0 %287
        %289 = vset.pattern.permute.xlu0 0
        %290 = vperm.xlu0 %289, %v267
        %v291 = vpop.permute.xlu0 %290
        %292 = vset.pattern.permute.xlu0 0
        %293 = vperm.xlu0 %292, %v268
        %v294 = vpop.permute.xlu0 %293
        %295 = vset.pattern.permute.xlu0 0
        %296 = vperm.xlu0 %295, %v269
        %v297 = vpop.permute.xlu0 %296
        %298 = vset.pattern.permute.xlu0 0
        %299 = vperm.xlu0 %298, %v270
        %v300 = vpop.permute.xlu0 %299
        %301 = vset.pattern.permute.xlu0 0
        %302 = vperm.xlu0 %301, %v271
        %v303 = vpop.permute.xlu0 %302
        %304 = vset.pattern.permute.xlu0 0
        %305 = vperm.xlu0 %304, %v272
        %v306 = vpop.permute.xlu0 %305
        %307 = vset.pattern.permute.xlu0 0
        %308 = vperm.xlu0 %307, %v273
        %v309 = vpop.permute.xlu0 %308
        %310 = vset.pattern.permute.xlu0 0
        %311 = vperm.xlu0 %310, %v274
        %v312 = vpop.permute.xlu0 %311
        %313 = vset.pattern.permute.xlu0 0
        %314 = vperm.xlu0 %313, %v275
        %v315 = vpop.permute.xlu0 %314
        %316 = vset.pattern.permute.xlu0 0
        %317 = vperm.xlu0 %316, %v276
        %v318 = vpop.permute.xlu0 %317
        %319 = vset.pattern.permute.xlu0 0
        %320 = vperm.xlu0 %319, %v277
        %v321 = vpop.permute.xlu0 %320
        %322 = vset.pattern.permute.xlu0 0
        %323 = vperm.xlu0 %322, %v278
        %v324 = vpop.permute.xlu0 %323
        %325 = vset.pattern.permute.xlu0 0
        %326 = vperm.xlu0 %325, %v279
        %v327 = vpop.permute.xlu0 %326
        %328 = vset.pattern.permute.xlu0 0
        %329 = vperm.xlu0 %328, %v280
        %v330 = vpop.permute.xlu0 %329
        %331 = vset.pattern.permute.xlu0 0
        %332 = vperm.xlu0 %331, %v281
        %v333 = vpop.permute.xlu0 %332
        %334 = vset.pattern.permute.xlu0 0
        %335 = vperm.xlu0 %334, %v282
        %v336 = vpop.permute.xlu0 %335
        %337 = vset.pattern.permute.xlu0 0
        %338 = vperm.xlu0 %337, %v283
        %v339 = vpop.permute.xlu0 %338
        %vm340 = vcmp.eq.s32.totalorder %v285, %v288
        %vm341 = vcmp.eq.s32.totalorder %v285, %v291
        %vm342 = vcmp.eq.s32.totalorder %v285, %v294
        %vm343 = vcmp.eq.s32.totalorder %v285, %v297
        %vm344 = vcmp.eq.s32.totalorder %v285, %v300
        %vm345 = vcmp.eq.s32.totalorder %v285, %v303
        %vm346 = vcmp.eq.s32.totalorder %v285, %v306
        %vm347 = vcmp.eq.s32.totalorder %v285, %v309
        %vm348 = vcmp.eq.s32.totalorder %v285, %v312
        %vm349 = vcmp.eq.s32.totalorder %v285, %v315
        %vm350 = vcmp.eq.s32.totalorder %v285, %v318
        %vm351 = vcmp.eq.s32.totalorder %v285, %v321
        %vm352 = vcmp.eq.s32.totalorder %v285, %v324
        %vm353 = vcmp.eq.s32.totalorder %v285, %v327
        %vm354 = vcmp.eq.s32.totalorder %v285, %v330
        %vm355 = vcmp.eq.s32.totalorder %v285, %v333
        %vm356 = vcmp.eq.s32.totalorder %v285, %v336
        %vm357 = vcmp.eq.s32.totalorder %v285, %v339
        %v358 = vsel %vm340, 1.0, 0.0
        %v359 = vsel %vm341, 1.0, 0.0
        %v360 = vsel %vm342, 1.0, 0.0
        %v361 = vsel %vm343, 1.0, 0.0
        %v362 = vsel %vm344, 1.0, 0.0
        %v363 = vsel %vm345, 1.0, 0.0
        %v364 = vsel %vm346, 1.0, 0.0
        %v365 = vsel %vm347, 1.0, 0.0
        %v366 = vsel %vm348, 1.0, 0.0
        %v367 = vsel %vm349, 1.0, 0.0
        %v368 = vsel %vm350, 1.0, 0.0
        %v369 = vsel %vm351, 1.0, 0.0
        %v370 = vsel %vm352, 1.0, 0.0
        %v371 = vsel %vm353, 1.0, 0.0
        %v372 = vsel %vm354, 1.0, 0.0
        %v373 = vsel %vm355, 1.0, 0.0
        %v374 = vsel %vm356, 1.0, 0.0
        %v375 = vsel %vm357, 1.0, 0.0
        %v376 = vpack.c.bf16 %v359, %v358
        %v377 = vpack.c.bf16 %v361, %v360
        %v378 = vpack.c.bf16 %v363, %v362
        %v379 = vpack.c.bf16 %v365, %v364
        %v380 = vpack.c.bf16 %v367, %v366
        %v381 = vpack.c.bf16 %v369, %v368
        %v382 = vpack.c.bf16 %v371, %v370
        %v383 = vpack.c.bf16 %v373, %v372
        %v384 = vpack.c.bf16 %v375, %v374
        %v385 = vld [vmem:[%s1] sm:$0xf]
        %v386 = vld [vmem:[%s1 + $0x4] sm:$0xf]
        %v387 = vld [vmem:[%s1 + $0x8] sm:$0xf]
        %v388 = vld [vmem:[%s1 + $0xc] sm:$0xf]
        %v389 = vld [vmem:[%s1 + $0x10] sm:$0x1]
        %v395 = vunpack.c.l.b16 %v385
        %v396 = vunpack.c.l.b16 %v386
        %v397 = vunpack.c.l.b16 %v387
        %v398 = vunpack.c.l.b16 %v388
        %v399 = vunpack.c.l.b16 %v389
        %v400 = vpack.c.b16 %v396, %v395
        %v401 = vpack.c.b16 %v398, %v397
        %v402 = vpack.c.b16 %v399, %v399
        %vm405 = vcmask 269312
        %v407 = vsel %vm405, %v376, 0
        %v410 = vsel %vm405, %v377, 0
        %v413 = vsel %vm405, %v378, 0
        %v416 = vsel %vm405, %v379, 0
        %v419 = vsel %vm405, %v380, 0
        %v422 = vsel %vm405, %v381, 0
        %v425 = vsel %vm405, %v382, 0
        %v428 = vsel %vm405, %v383, 0
        %v431 = vsel %vm405, %v384, 0
        %vm433 = vcmask 1040384
        %v434 = vsel 0, 4294967295, 65535
        %v435 = vsel %vm433, %v434, 0
        %v437 = vand.u32 %v402, %v435
        %439 = vmatprep.subr.bf16.mxu0 0
        %440 = vmatpush1.bf16.msra.mxu0 %v400
        %441 = vmatprep.subr.bf16.mxu0 0
        %442 = vmatpush1.bf16.msra.mxu0 %v401
        %443 = vmatprep.subr.bf16.mxu0 0
        %444 = vmatpush1.bf16.msra.mxu0 %v437
        %445 = vmatprep.subr.bf16.mxu0 0
        %446 = vmatpush1.bf16.msra.mxu0 0
        %447 = vmatprep.subr.bf16.mxu0 0
        %448 = vmatpush1.bf16.msra.mxu0 0
        %449 = vmatprep.subr.bf16.mxu0 0
        %450 = vmatpush1.bf16.msra.mxu0 0
        %451 = vmatprep.subr.bf16.mxu0 0
        %452 = vmatpush1.bf16.msra.mxu0 0
        %453 = vmatprep.subr.bf16.mxu0 0
        %454 = vmatpush1.bf16.msra.mxu0 0
        %455 = vmatprep.subr.bf16.mxu0 0
        %456 = vmatpush1.bf16.msra.mxu0 0
        %457 = vmatprep.subr.bf16.mxu0 0
        %458 = vmatpush1.bf16.msra.mxu0 0
        %459 = vmatprep.subr.bf16.mxu0 0
        %460 = vmatpush1.bf16.msra.mxu0 0
        %461 = vmatprep.subr.bf16.mxu0 0
        %462 = vmatpush1.bf16.msra.mxu0 0
        %463 = vmatprep.subr.bf16.mxu0 0
        %464 = vmatpush1.bf16.msra.mxu0 0
        %465 = vmatprep.subr.bf16.mxu0 0
        %466 = vmatpush1.bf16.msra.mxu0 0
        %467 = vmatprep.subr.bf16.mxu0 0
        %468 = vmatpush1.bf16.msra.mxu0 0
        %469 = vmatprep.subr.bf16.mxu0 0
        %470 = vmatpush1.bf16.msra.mxu0 0
        %471 = vmatprep.mubr.bf16.mxu0 0
        %472 = vmatmul.mubr.bf16.gmra.mrb[0].mxu0 %v407
        %v473 = vpop.f32.mrb[0].mxu0
        %v474 = vadd.f32 0.0, %v473
        %v475 = vpop.f32.mrb[0].mxu0
        %v476 = vpop.f32.mrb[0].mxu0
        %v477 = vadd.f32 0.0, %v476
        %v478 = vpop.f32.mrb[0].mxu0
        %479 = vmatprep.mubr.bf16.mxu0 0
        %480 = vmatmul.mubr.bf16.gmra.mrb[0].mxu0 %v410
        %v481 = vpop.f32.mrb[0].mxu0
        %v482 = vadd.f32 0.0, %v481
        %v483 = vpop.f32.mrb[0].mxu0
        %v484 = vpop.f32.mrb[0].mxu0
        %v485 = vadd.f32 0.0, %v484
        %v486 = vpop.f32.mrb[0].mxu0
        %487 = vmatprep.mubr.bf16.mxu0 0
        %488 = vmatmul.mubr.bf16.gmra.mrb[0].mxu0 %v413
        %v489 = vpop.f32.mrb[0].mxu0
        %v490 = vadd.f32 0.0, %v489
        %v491 = vpop.f32.mrb[0].mxu0
        %v492 = vpop.f32.mrb[0].mxu0
        %v493 = vadd.f32 0.0, %v492
        %v494 = vpop.f32.mrb[0].mxu0
        %495 = vmatprep.mubr.bf16.mxu0 0
        %496 = vmatmul.mubr.bf16.gmra.mrb[0].mxu0 %v416
        %v497 = vpop.f32.mrb[0].mxu0
        %v498 = vadd.f32 0.0, %v497
        %v499 = vpop.f32.mrb[0].mxu0
        %v500 = vpop.f32.mrb[0].mxu0
        %v501 = vadd.f32 0.0, %v500
        %v502 = vpop.f32.mrb[0].mxu0
        %503 = vmatprep.mubr.bf16.mxu0 0
        %504 = vmatmul.mubr.bf16.gmra.mrb[0].mxu0 %v419
        %v505 = vpop.f32.mrb[0].mxu0
        %v506 = vadd.f32 0.0, %v505
        %v507 = vpop.f32.mrb[0].mxu0
        %v508 = vpop.f32.mrb[0].mxu0
        %v509 = vadd.f32 0.0, %v508
        %v510 = vpop.f32.mrb[0].mxu0
        %511 = vmatprep.mubr.bf16.mxu0 0
        %512 = vmatmul.mubr.bf16.gmra.mrb[0].mxu0 %v422
        %v513 = vpop.f32.mrb[0].mxu0
        %v514 = vadd.f32 0.0, %v513
        %v515 = vpop.f32.mrb[0].mxu0
        %v516 = vpop.f32.mrb[0].mxu0
        %v517 = vadd.f32 0.0, %v516
        %v518 = vpop.f32.mrb[0].mxu0
        %519 = vmatprep.mubr.bf16.mxu0 0
        %520 = vmatmul.mubr.bf16.gmra.mrb[0].mxu0 %v425
        %v521 = vpop.f32.mrb[0].mxu0
        %v522 = vadd.f32 0.0, %v521
        %v523 = vpop.f32.mrb[0].mxu0
        %v524 = vpop.f32.mrb[0].mxu0
        %v525 = vadd.f32 0.0, %v524
        %v526 = vpop.f32.mrb[0].mxu0
        %527 = vmatprep.mubr.bf16.mxu0 0
        %528 = vmatmul.mubr.bf16.gmra.mrb[0].mxu0 %v428
        %v529 = vpop.f32.mrb[0].mxu0
        %v530 = vadd.f32 0.0, %v529
        %v531 = vpop.f32.mrb[0].mxu0
        %v532 = vpop.f32.mrb[0].mxu0
        %v533 = vadd.f32 0.0, %v532
        %v534 = vpop.f32.mrb[0].mxu0
        %535 = vmatprep.mubr.bf16.mxu0 0
        %536 = vmatmul.mubr.bf16.gmra.mrb[0].mxu0 %v431
        %v537 = vpop.f32.mrb[0].mxu0
        %v538 = vadd.f32 0.0, %v537
        %v539 = vpop.f32.mrb[0].mxu0
        %v540 = vpop.f32.mrb[0].mxu0
        %v541 = vadd.f32 0.0, %v540
        %v542 = vpop.f32.mrb[0].mxu0
        %543 = vdwg.mxu0
        %v544 = vsel %vm405, %v474, -inf
        %545 = vmax.xlane.f32.xlu0 %v544
        %v546 = vpop.xlane.xlu0 %545
        %v547 = vsel %vm405, %v477, -inf
        %548 = vmax.xlane.f32.xlu0 %v547
        %v549 = vpop.xlane.xlu0 %548
        %v550 = vsel %vm405, %v482, -inf
        %551 = vmax.xlane.f32.xlu0 %v550
        %v552 = vpop.xlane.xlu0 %551
        %v553 = vsel %vm405, %v485, -inf
        %554 = vmax.xlane.f32.xlu0 %v553
        %v555 = vpop.xlane.xlu0 %554
        %v556 = vsel %vm405, %v490, -inf
        %557 = vmax.xlane.f32.xlu0 %v556
        %v558 = vpop.xlane.xlu0 %557
        %v559 = vsel %vm405, %v493, -inf
        %560 = vmax.xlane.f32.xlu0 %v559
        %v561 = vpop.xlane.xlu0 %560
        %v562 = vsel %vm405, %v498, -inf
        %563 = vmax.xlane.f32.xlu0 %v562
        %v564 = vpop.xlane.xlu0 %563
        %v565 = vsel %vm405, %v501, -inf
        %566 = vmax.xlane.f32.xlu0 %v565
        %v567 = vpop.xlane.xlu0 %566
        %v568 = vsel %vm405, %v506, -inf
        %569 = vmax.xlane.f32.xlu0 %v568
        %v570 = vpop.xlane.xlu0 %569
        %v571 = vsel %vm405, %v509, -inf
        %572 = vmax.xlane.f32.xlu0 %v571
        %v573 = vpop.xlane.xlu0 %572
        %v574 = vsel %vm405, %v514, -inf
        %575 = vmax.xlane.f32.xlu0 %v574
        %v576 = vpop.xlane.xlu0 %575
        %v577 = vsel %vm405, %v517, -inf
        %578 = vmax.xlane.f32.xlu0 %v577
        %v579 = vpop.xlane.xlu0 %578
        %v580 = vsel %vm405, %v522, -inf
        %581 = vmax.xlane.f32.xlu0 %v580
        %v582 = vpop.xlane.xlu0 %581
        %v583 = vsel %vm405, %v525, -inf
        %584 = vmax.xlane.f32.xlu0 %v583
        %v585 = vpop.xlane.xlu0 %584
        %v586 = vsel %vm405, %v530, -inf
        %587 = vmax.xlane.f32.xlu0 %v586
        %v588 = vpop.xlane.xlu0 %587
        %v589 = vsel %vm405, %v533, -inf
        %590 = vmax.xlane.f32.xlu0 %v589
        %v591 = vpop.xlane.xlu0 %590
        %v592 = vsel %vm405, %v538, -inf
        %593 = vmax.xlane.f32.xlu0 %v592
        %v594 = vpop.xlane.xlu0 %593
        %v595 = vsel %vm405, %v541, -inf
        %596 = vmax.xlane.f32.xlu0 %v595
        %v597 = vpop.xlane.xlu0 %596
        %v598 = vsub.f32 %v474, %v546
        %v599 = vsub.f32 %v477, %v549
        %v600 = vsub.f32 %v482, %v552
        %v601 = vsub.f32 %v485, %v555
        %v602 = vsub.f32 %v490, %v558
        %v603 = vsub.f32 %v493, %v561
        %v604 = vsub.f32 %v498, %v564
        %v605 = vsub.f32 %v501, %v567
        %v606 = vsub.f32 %v506, %v570
        %v607 = vsub.f32 %v509, %v573
        %v608 = vsub.f32 %v514, %v576
        %v609 = vsub.f32 %v517, %v579
        %v610 = vsub.f32 %v522, %v582
        %v611 = vsub.f32 %v525, %v585
        %v612 = vsub.f32 %v530, %v588
        %v613 = vsub.f32 %v533, %v591
        %v614 = vsub.f32 %v538, %v594
        %v615 = vsub.f32 %v541, %v597
        %v616 = vmul.f32 %v598, 1.442695
        %v617 = vpow.pop %v616
        %v618 = vmul.f32 %v599, 1.442695
        %v619 = vpow.pop %v618
        %v620 = vmul.f32 %v600, 1.442695
        %v621 = vpow.pop %v620
        %v622 = vmul.f32 %v601, 1.442695
        %v623 = vpow.pop %v622
        %v624 = vmul.f32 %v602, 1.442695
        %v625 = vpow.pop %v624
        %v626 = vmul.f32 %v603, 1.442695
        %v627 = vpow.pop %v626
        %v628 = vmul.f32 %v604, 1.442695
        %v629 = vpow.pop %v628
        %v630 = vmul.f32 %v605, 1.442695
        %v631 = vpow.pop %v630
        %v632 = vmul.f32 %v606, 1.442695
        %v633 = vpow.pop %v632
        %v634 = vmul.f32 %v607, 1.442695
        %v635 = vpow.pop %v634
        %v636 = vmul.f32 %v608, 1.442695
        %v637 = vpow.pop %v636
        %v638 = vmul.f32 %v609, 1.442695
        %v639 = vpow.pop %v638
        %v640 = vmul.f32 %v610, 1.442695
        %v641 = vpow.pop %v640
        %v642 = vmul.f32 %v611, 1.442695
        %v643 = vpow.pop %v642
        %v644 = vmul.f32 %v612, 1.442695
        %v645 = vpow.pop %v644
        %v646 = vmul.f32 %v613, 1.442695
        %v647 = vpow.pop %v646
        %v648 = vmul.f32 %v614, 1.442695
        %v649 = vpow.pop %v648
        %v650 = vmul.f32 %v615, 1.442695
        %v651 = vpow.pop %v650
        %v652 = vsel %vm405, %v617, 0.0
        %653 = vadd.xlane.f32.xlu0 %v652
        %v654 = vpop.xlane.xlu0 %653
        %v655 = vsel %vm405, %v619, 0.0
        %656 = vadd.xlane.f32.xlu0 %v655
        %v657 = vpop.xlane.xlu0 %656
        %v658 = vsel %vm405, %v621, 0.0
        %659 = vadd.xlane.f32.xlu0 %v658
        %v660 = vpop.xlane.xlu0 %659
        %v661 = vsel %vm405, %v623, 0.0
        %662 = vadd.xlane.f32.xlu0 %v661
        %v663 = vpop.xlane.xlu0 %662
        %v664 = vsel %vm405, %v625, 0.0
        %665 = vadd.xlane.f32.xlu0 %v664
        %v666 = vpop.xlane.xlu0 %665
        %v667 = vsel %vm405, %v627, 0.0
        %668 = vadd.xlane.f32.xlu0 %v667
        %v669 = vpop.xlane.xlu0 %668
        %v670 = vsel %vm405, %v629, 0.0
        %671 = vadd.xlane.f32.xlu0 %v670
        %v672 = vpop.xlane.xlu0 %671
        %v673 = vsel %vm405, %v631, 0.0
        %674 = vadd.xlane.f32.xlu0 %v673
        %v675 = vpop.xlane.xlu0 %674
        %v676 = vsel %vm405, %v633, 0.0
        %677 = vadd.xlane.f32.xlu0 %v676
        %v678 = vpop.xlane.xlu0 %677
        %v679 = vsel %vm405, %v635, 0.0
        %680 = vadd.xlane.f32.xlu0 %v679
        %v681 = vpop.xlane.xlu0 %680
        %v682 = vsel %vm405, %v637, 0.0
        %683 = vadd.xlane.f32.xlu0 %v682
        %v684 = vpop.xlane.xlu0 %683
        %v685 = vsel %vm405, %v639, 0.0
        %686 = vadd.xlane.f32.xlu0 %v685
        %v687 = vpop.xlane.xlu0 %686
        %v688 = vsel %vm405, %v641, 0.0
        %689 = vadd.xlane.f32.xlu0 %v688
        %v690 = vpop.xlane.xlu0 %689
        %v691 = vsel %vm405, %v643, 0.0
        %692 = vadd.xlane.f32.xlu0 %v691
        %v693 = vpop.xlane.xlu0 %692
        %v694 = vsel %vm405, %v645, 0.0
        %695 = vadd.xlane.f32.xlu0 %v694
        %v696 = vpop.xlane.xlu0 %695
        %v697 = vsel %vm405, %v647, 0.0
        %698 = vadd.xlane.f32.xlu0 %v697
        %v699 = vpop.xlane.xlu0 %698
        %v700 = vsel %vm405, %v649, 0.0
        %701 = vadd.xlane.f32.xlu0 %v700
        %v702 = vpop.xlane.xlu0 %701
        %v703 = vsel %vm405, %v651, 0.0
        %704 = vadd.xlane.f32.xlu0 %v703
        %v705 = vpop.xlane.xlu0 %704
        %v706 = vlog2.pop %v654
        %v707 = vmul.f32 %v706, 0.6931472
        %v708 = vlog2.pop %v657
        %v709 = vmul.f32 %v708, 0.6931472
        %v710 = vlog2.pop %v660
        %v711 = vmul.f32 %v710, 0.6931472
        %v712 = vlog2.pop %v663
        %v713 = vmul.f32 %v712, 0.6931472
        %v714 = vlog2.pop %v666
        %v715 = vmul.f32 %v714, 0.6931472
        %v716 = vlog2.pop %v669
        %v717 = vmul.f32 %v716, 0.6931472
        %v718 = vlog2.pop %v672
        %v719 = vmul.f32 %v718, 0.6931472
        %v720 = vlog2.pop %v675
        %v721 = vmul.f32 %v720, 0.6931472
        %v722 = vlog2.pop %v678
        %v723 = vmul.f32 %v722, 0.6931472
        %v724 = vlog2.pop %v681
        %v725 = vmul.f32 %v724, 0.6931472
        %v726 = vlog2.pop %v684
        %v727 = vmul.f32 %v726, 0.6931472
        %v728 = vlog2.pop %v687
        %v729 = vmul.f32 %v728, 0.6931472
        %v730 = vlog2.pop %v690
        %v731 = vmul.f32 %v730, 0.6931472
        %v732 = vlog2.pop %v693
        %v733 = vmul.f32 %v732, 0.6931472
        %v734 = vlog2.pop %v696
        %v735 = vmul.f32 %v734, 0.6931472
        %v736 = vlog2.pop %v699
        %v737 = vmul.f32 %v736, 0.6931472
        %v738 = vlog2.pop %v702
        %v739 = vmul.f32 %v738, 0.6931472
        %v740 = vlog2.pop %v705
        %v741 = vmul.f32 %v740, 0.6931472
        %v742 = vsub.f32 %v598, %v707
        %v743 = vsub.f32 %v599, %v709
        %v744 = vsub.f32 %v600, %v711
        %v745 = vsub.f32 %v601, %v713
        %v746 = vsub.f32 %v602, %v715
        %v747 = vsub.f32 %v603, %v717
        %v748 = vsub.f32 %v604, %v719
        %v749 = vsub.f32 %v605, %v721
        %v750 = vsub.f32 %v606, %v723
        %v751 = vsub.f32 %v607, %v725
        %v752 = vsub.f32 %v608, %v727
        %v753 = vsub.f32 %v609, %v729
        %v754 = vsub.f32 %v610, %v731
        %v755 = vsub.f32 %v611, %v733
        %v756 = vsub.f32 %v612, %v735
        %v757 = vsub.f32 %v613, %v737
        %v758 = vsub.f32 %v614, %v739
        %v759 = vsub.f32 %v615, %v741
        %v760 = vrcp.pop %v654
        %v761 = vrcp.pop %v657
        %v762 = vrcp.pop %v660
        %v763 = vrcp.pop %v663
        %v764 = vrcp.pop %v666
        %v765 = vrcp.pop %v669
        %v766 = vrcp.pop %v672
        %v767 = vrcp.pop %v675
        %v768 = vrcp.pop %v678
        %v769 = vrcp.pop %v681
        %v770 = vrcp.pop %v684
        %v771 = vrcp.pop %v687
        %v772 = vrcp.pop %v690
        %v773 = vrcp.pop %v693
        %v774 = vrcp.pop %v696
        %v775 = vrcp.pop %v699
        %v776 = vrcp.pop %v702
        %v777 = vrcp.pop %v705
        %v778 = vmul.f32 %v617, %v760
        %v779 = vmul.f32 %v619, %v761
        %v780 = vmul.f32 %v621, %v762
        %v781 = vmul.f32 %v623, %v763
        %v782 = vmul.f32 %v625, %v764
        %v783 = vmul.f32 %v627, %v765
        %v784 = vmul.f32 %v629, %v766
        %v785 = vmul.f32 %v631, %v767
        %v786 = vmul.f32 %v633, %v768
        %v787 = vmul.f32 %v635, %v769
        %v788 = vmul.f32 %v637, %v770
        %v789 = vmul.f32 %v639, %v771
        %v790 = vmul.f32 %v641, %v772
        %v791 = vmul.f32 %v643, %v773
        %v792 = vmul.f32 %v645, %v774
        %v793 = vmul.f32 %v647, %v775
        %v794 = vmul.f32 %v649, %v776
        %v795 = vmul.f32 %v651, %v777
        %vm796 = vcmp.ne.s32.totalorder %v266, 1
        %vm797 = vcmp.ne.s32.totalorder %v267, 1
        %vm798 = vcmp.ne.s32.totalorder %v268, 1
        %vm799 = vcmp.ne.s32.totalorder %v269, 1
        %vm800 = vcmp.ne.s32.totalorder %v270, 1
        %vm801 = vcmp.ne.s32.totalorder %v271, 1
        %vm802 = vcmp.ne.s32.totalorder %v272, 1
        %vm803 = vcmp.ne.s32.totalorder %v273, 1
        %vm804 = vcmp.ne.s32.totalorder %v274, 1
        %vm805 = vcmp.ne.s32.totalorder %v275, 1
        %vm806 = vcmp.ne.s32.totalorder %v276, 1
        %vm807 = vcmp.ne.s32.totalorder %v277, 1
        %vm808 = vcmp.ne.s32.totalorder %v278, 1
        %vm809 = vcmp.ne.s32.totalorder %v279, 1
        %vm810 = vcmp.ne.s32.totalorder %v280, 1
        %vm811 = vcmp.ne.s32.totalorder %v281, 1
        %vm812 = vcmp.ne.s32.totalorder %v282, 1
        %vm813 = vcmp.ne.s32.totalorder %v283, 1
        %v814 = vsel %vm796, 1.0, 0.0
        %v815 = vsel %vm797, 1.0, 0.0
        %v816 = vsel %vm798, 1.0, 0.0
        %v817 = vsel %vm799, 1.0, 0.0
        %v818 = vsel %vm800, 1.0, 0.0
        %v819 = vsel %vm801, 1.0, 0.0
        %v820 = vsel %vm802, 1.0, 0.0
        %v821 = vsel %vm803, 1.0, 0.0
        %v822 = vsel %vm804, 1.0, 0.0
        %v823 = vsel %vm805, 1.0, 0.0
        %v824 = vsel %vm806, 1.0, 0.0
        %v825 = vsel %vm807, 1.0, 0.0
        %v826 = vsel %vm808, 1.0, 0.0
        %v827 = vsel %vm809, 1.0, 0.0
        %v828 = vsel %vm810, 1.0, 0.0
        %v829 = vsel %vm811, 1.0, 0.0
        %v830 = vsel %vm812, 1.0, 0.0
        %v831 = vsel %vm813, 1.0, 0.0
        %v832 = vmul.f32 %v358, %v742
        %v833 = vmul.f32 %v359, %v743
        %v834 = vmul.f32 %v360, %v744
        %v835 = vmul.f32 %v361, %v745
        %v836 = vmul.f32 %v362, %v746
        %v837 = vmul.f32 %v363, %v747
        %v838 = vmul.f32 %v364, %v748
        %v839 = vmul.f32 %v365, %v749
        %v840 = vmul.f32 %v366, %v750
        %v841 = vmul.f32 %v367, %v751
        %v842 = vmul.f32 %v368, %v752
        %v843 = vmul.f32 %v369, %v753
        %v844 = vmul.f32 %v370, %v754
        %v845 = vmul.f32 %v371, %v755
        %v846 = vmul.f32 %v372, %v756
        %v847 = vmul.f32 %v373, %v757
        %v848 = vmul.f32 %v374, %v758
        %v849 = vmul.f32 %v375, %v759
        %v850 = vsel %vm405, %v832, 0.0
        %851 = vadd.xlane.f32.xlu0 %v850
        %v852 = vpop.xlane.xlu0 %851
        %v853 = vsel %vm405, %v833, 0.0
        %854 = vadd.xlane.f32.xlu0 %v853
        %v855 = vpop.xlane.xlu0 %854
        %v856 = vsel %vm405, %v834, 0.0
        %857 = vadd.xlane.f32.xlu0 %v856
        %v858 = vpop.xlane.xlu0 %857
        %v859 = vsel %vm405, %v835, 0.0
        %860 = vadd.xlane.f32.xlu0 %v859
        %v861 = vpop.xlane.xlu0 %860
        %v862 = vsel %vm405, %v836, 0.0
        %863 = vadd.xlane.f32.xlu0 %v862
        %v864 = vpop.xlane.xlu0 %863
        %v865 = vsel %vm405, %v837, 0.0
        %866 = vadd.xlane.f32.xlu0 %v865
        %v867 = vpop.xlane.xlu0 %866
        %v868 = vsel %vm405, %v838, 0.0
        %869 = vadd.xlane.f32.xlu0 %v868
        %v870 = vpop.xlane.xlu0 %869
        %v871 = vsel %vm405, %v839, 0.0
        %872 = vadd.xlane.f32.xlu0 %v871
        %v873 = vpop.xlane.xlu0 %872
        %v874 = vsel %vm405, %v840, 0.0
        %875 = vadd.xlane.f32.xlu0 %v874
        %v876 = vpop.xlane.xlu0 %875
        %v877 = vsel %vm405, %v841, 0.0
        %878 = vadd.xlane.f32.xlu0 %v877
        %v879 = vpop.xlane.xlu0 %878
        %v880 = vsel %vm405, %v842, 0.0
        %881 = vadd.xlane.f32.xlu0 %v880
        %v882 = vpop.xlane.xlu0 %881
        %v883 = vsel %vm405, %v843, 0.0
        %884 = vadd.xlane.f32.xlu0 %v883
        %v885 = vpop.xlane.xlu0 %884
        %v886 = vsel %vm405, %v844, 0.0
        %887 = vadd.xlane.f32.xlu0 %v886
        %v888 = vpop.xlane.xlu0 %887
        %v889 = vsel %vm405, %v845, 0.0
        %890 = vadd.xlane.f32.xlu0 %v889
        %v891 = vpop.xlane.xlu0 %890
        %v892 = vsel %vm405, %v846, 0.0
        %893 = vadd.xlane.f32.xlu0 %v892
        %v894 = vpop.xlane.xlu0 %893
        %v895 = vsel %vm405, %v847, 0.0
        %896 = vadd.xlane.f32.xlu0 %v895
        %v897 = vpop.xlane.xlu0 %896
        %v898 = vsel %vm405, %v848, 0.0
        %899 = vadd.xlane.f32.xlu0 %v898
        %v900 = vpop.xlane.xlu0 %899
        %v901 = vsel %vm405, %v849, 0.0
        %902 = vadd.xlane.f32.xlu0 %v901
        %v903 = vpop.xlane.xlu0 %902
        %v904 = vmul.f32 %v852, %v814
        %v905 = vmul.f32 %v855, %v815
        %v906 = vmul.f32 %v858, %v816
        %v907 = vmul.f32 %v861, %v817
        %v908 = vmul.f32 %v864, %v818
        %v909 = vmul.f32 %v867, %v819
        %v910 = vmul.f32 %v870, %v820
        %v911 = vmul.f32 %v873, %v821
        %v912 = vmul.f32 %v876, %v822
        %v913 = vmul.f32 %v879, %v823
        %v914 = vmul.f32 %v882, %v824
        %v915 = vmul.f32 %v885, %v825
        %v916 = vmul.f32 %v888, %v826
        %v917 = vmul.f32 %v891, %v827
        %v918 = vmul.f32 %v894, %v828
        %v919 = vmul.f32 %v897, %v829
        %v920 = vmul.f32 %v900, %v830
        %v921 = vmul.f32 %v903, %v831
        %v922 = vld [vmem:[%s4] sm:$0xff]
        %v923 = vld [vmem:[%s4 + $0x8] sm:$0xff]
        %v924 = vld [vmem:[%s4 + $0x10] sm:$0xff]
        %v925 = vld [vmem:[%s4 + $0x18] sm:$0xff]
        %vm926 = vcmask 130048
        %v928 = vsel %vm926, %v923, 0
        %v931 = vsel %vm926, %v925, 0
        %933 = vmatprep.subr.mxu0 0.0
        %934 = vmatpush1.msra.mxu0 %v904
        %935 = vmatprep.subr.mxu0 0.0
        %936 = vmatpush1.msra.mxu0 %v905
        %937 = vmatprep.subr.mxu0 0.0
        %938 = vmatpush1.msra.mxu0 %v906
        %939 = vmatprep.subr.mxu0 0.0
        %940 = vmatpush1.msra.mxu0 %v907
        %941 = vmatprep.subr.mxu0 0.0
        %942 = vmatpush1.msra.mxu0 %v908
        %943 = vmatprep.subr.mxu0 0.0
        %944 = vmatpush1.msra.mxu0 %v909
        %945 = vmatprep.subr.mxu0 0.0
        %946 = vmatpush1.msra.mxu0 %v910
        %947 = vmatprep.subr.mxu0 0.0
        %948 = vmatpush1.msra.mxu0 %v911
        %949 = vmatprep.subr.mxu0 0.0
        %950 = vmatpush1.msra.mxu0 %v912
        %951 = vmatprep.subr.mxu0 0.0
        %952 = vmatpush1.msra.mxu0 %v913
        %953 = vmatprep.subr.mxu0 0.0
        %954 = vmatpush1.msra.mxu0 %v914
        %955 = vmatprep.subr.mxu0 0.0
        %956 = vmatpush1.msra.mxu0 %v915
        %957 = vmatprep.subr.mxu0 0.0
        %958 = vmatpush1.msra.mxu0 %v916
        %959 = vmatprep.subr.mxu0 0.0
        %960 = vmatpush1.msra.mxu0 %v917
        %961 = vmatprep.subr.mxu0 0.0
        %962 = vmatpush1.msra.mxu0 %v918
        %963 = vmatprep.subr.mxu0 0.0
        %964 = vmatpush1.msra.mxu0 %v919
        %965 = vmatprep.subr.mxu0 0.0
        %966 = vmatpush1.msra.mxu0 %v920
        %967 = vmatprep.subr.mxu0 0.0
        %968 = vmatpush1.msra.mxu0 %v921
        %969 = vmatprep.subr.mxu0 0.0
        %970 = vmatpush1.msra.mxu0 0.0
        %971 = vmatprep.subr.mxu0 0.0
        %972 = vmatpush1.msra.mxu0 0.0
        %973 = vmatprep.subr.mxu0 0.0
        %974 = vmatpush1.msra.mxu0 0.0
        %975 = vmatprep.subr.mxu0 0.0
        %976 = vmatpush1.msra.mxu0 0.0
        %977 = vmatprep.subr.mxu0 0.0
        %978 = vmatpush1.msra.mxu0 0.0
        %979 = vmatprep.subr.mxu0 0.0
        %980 = vmatpush1.msra.mxu0 0.0
        %981 = vmatprep.subr.mxu0 0.0
        %982 = vmatpush1.msra.mxu0 0.0
        %983 = vmatprep.subr.mxu0 0.0
        %984 = vmatpush1.msra.mxu0 0.0
        %985 = vmatprep.subr.mxu0 0.0
        %986 = vmatpush1.msra.mxu0 0.0
        %987 = vmatprep.subr.mxu0 0.0
        %988 = vmatpush1.msra.mxu0 0.0
        %989 = vmatprep.subr.mxu0 0.0
        %990 = vmatpush1.msra.mxu0 0.0
        %991 = vmatprep.subr.mxu0 0.0
        %992 = vmatpush1.msra.mxu0 0.0
        %993 = vmatprep.subr.mxu0 0.0
        %994 = vmatpush1.msra.mxu0 0.0
        %995 = vmatprep.subr.mxu0 0.0
        %996 = vmatpush1.msra.mxu0 0.0
        %997 = vmatprep.mubr.f32.mxu0 %v928
        %998 = vmatmul.mubr.f32.gmra.mrb[0].mxu0 %v922
        %v999 = vpop.f32.mrb[0].mxu0
        %v1000 = vadd.f32 0.0, %v999
        %v1001 = vpop.f32.mrb[0].mxu0
        %1002 = vmatprep.mubr.f32.mxu0 %v931
        %1003 = vmatmul.mubr.f32.gmra.mrb[0].mxu0 %v924
        %v1004 = vpop.f32.mrb[0].mxu0
        %v1005 = vadd.f32 0.0, %v1004
        %v1006 = vpop.f32.mrb[0].mxu0
        %1007 = vdwg.mxu0
        %1009 = vset.pattern.permute.xlu0 0
        %1010 = vperm.xlu0 %1009, %v1000
        %v1011 = vpop.permute.xlu0 %1010
        %1014 = vset.pattern.permute.xlu0 0
        %1015 = vperm.xlu0 %1014, %v1005
        %v1016 = vpop.permute.xlu0 %1015
        %1018 = vst [vmem:[%s249] sm:$0xff] %v1011
        %1019 = vst [vmem:[%s249 + $0x8] sm:$0xff] %v1016
        %v1020 = vpack.c.bf16 %v743, %v742
        %v1021 = vpack.c.bf16 %v745, %v744
        %v1022 = vpack.c.bf16 %v747, %v746
        %v1023 = vpack.c.bf16 %v749, %v748
        %v1024 = vpack.c.bf16 %v751, %v750
        %v1025 = vpack.c.bf16 %v753, %v752
        %v1026 = vpack.c.bf16 %v755, %v754
        %v1027 = vpack.c.bf16 %v757, %v756
        %v1028 = vpack.c.bf16 %v759, %v758
        %v1029 = vld [vmem:[%s2] sm:$0xf]
        %v1030 = vld [vmem:[%s2 + $0x4] sm:$0xf]
        %v1031 = vld [vmem:[%s2 + $0x8] sm:$0xf]
        %v1032 = vld [vmem:[%s2 + $0xc] sm:$0xf]
        %v1033 = vld [vmem:[%s2 + $0x10] sm:$0x1]
        %v1034 = vsub.f32 %v358, %v778
        %v1035 = vsub.f32 %v359, %v779
        %v1036 = vsub.f32 %v360, %v780
        %v1037 = vsub.f32 %v361, %v781
        %v1038 = vsub.f32 %v362, %v782
        %v1039 = vsub.f32 %v363, %v783
        %v1040 = vsub.f32 %v364, %v784
        %v1041 = vsub.f32 %v365, %v785
        %v1042 = vsub.f32 %v366, %v786
        %v1043 = vsub.f32 %v367, %v787
        %v1044 = vsub.f32 %v368, %v788
        %v1045 = vsub.f32 %v369, %v789
        %v1046 = vsub.f32 %v370, %v790
        %v1047 = vsub.f32 %v371, %v791
        %v1048 = vsub.f32 %v372, %v792
        %v1049 = vsub.f32 %v373, %v793
        %v1050 = vsub.f32 %v374, %v794
        %v1051 = vsub.f32 %v375, %v795
        %v1052 = vpack.c.bf16 %v1035, %v1034
        %v1053 = vpack.c.bf16 %v1037, %v1036
        %v1054 = vpack.c.bf16 %v1039, %v1038
        %v1055 = vpack.c.bf16 %v1041, %v1040
        %v1056 = vpack.c.bf16 %v1043, %v1042
        %v1057 = vpack.c.bf16 %v1045, %v1044
        %v1058 = vpack.c.bf16 %v1047, %v1046
        %v1059 = vpack.c.bf16 %v1049, %v1048
        %v1060 = vpack.c.bf16 %v1051, %v1050
        %v1061 = vld [vmem:[%s3] sm:$0xf]
        %v1062 = vld [vmem:[%s3 + $0x4] sm:$0xf]
        %v1063 = vld [vmem:[%s3 + $0x8] sm:$0xf]
        %v1064 = vld [vmem:[%s3 + $0xc] sm:$0xf]
        %v1065 = vld [vmem:[%s3 + $0x10] sm:$0x1]
        %v1071 = vunpack.c.l.b16 %v1061
        %v1072 = vunpack.c.l.b16 %v1062
        %v1073 = vunpack.c.l.b16 %v1063
        %v1074 = vunpack.c.l.b16 %v1064
        %v1075 = vunpack.c.l.b16 %v1065
        %v1076 = vpack.c.b16 %v1072, %v1071
        %v1077 = vpack.c.b16 %v1074, %v1073
        %v1078 = vpack.c.b16 %v1075, %v1075
        %v1082 = vsel %vm405, %v1052, 0
        %v1085 = vsel %vm405, %v1053, 0
        %v1088 = vsel %vm405, %v1054, 0
        %v1091 = vsel %vm405, %v1055, 0
        %v1094 = vsel %vm405, %v1056, 0
        %v1097 = vsel %vm405, %v1057, 0
        %v1100 = vsel %vm405, %v1058, 0
        %v1103 = vsel %vm405, %v1059, 0
        %v1106 = vsel %vm405, %v1060, 0
        %v1109 = vand.u32 %v1078, %v435
        %1111 = vmatprep.subr.bf16.mxu0 0
        %1112 = vmatpush1.bf16.msra.mxu0 %v1076
        %1113 = vmatprep.subr.bf16.mxu0 0
        %1114 = vmatpush1.bf16.msra.mxu0 %v1077
        %1115 = vmatprep.subr.bf16.mxu0 0
        %1116 = vmatpush1.bf16.msra.mxu0 %v1109
        %1117 = vmatprep.subr.bf16.mxu0 0
        %1118 = vmatpush1.bf16.msra.mxu0 0
        %1119 = vmatprep.subr.bf16.mxu0 0
        %1120 = vmatpush1.bf16.msra.mxu0 0
        %1121 = vmatprep.subr.bf16.mxu0 0
        %1122 = vmatpush1.bf16.msra.mxu0 0
        %1123 = vmatprep.subr.bf16.mxu0 0
        %1124 = vmatpush1.bf16.msra.mxu0 0
        %1125 = vmatprep.subr.bf16.mxu0 0
        %1126 = vmatpush1.bf16.msra.mxu0 0
        %1127 = vmatprep.subr.bf16.mxu0 0
        %1128 = vmatpush1.bf16.msra.mxu0 0
        %1129 = vmatprep.subr.bf16.mxu0 0
        %1130 = vmatpush1.bf16.msra.mxu0 0
        %1131 = vmatprep.subr.bf16.mxu0 0
        %1132 = vmatpush1.bf16.msra.mxu0 0
        %1133 = vmatprep.subr.bf16.mxu0 0
        %1134 = vmatpush1.bf16.msra.mxu0 0
        %1135 = vmatprep.subr.bf16.mxu0 0
        %1136 = vmatpush1.bf16.msra.mxu0 0
        %1137 = vmatprep.subr.bf16.mxu0 0
        %1138 = vmatpush1.bf16.msra.mxu0 0
        %1139 = vmatprep.subr.bf16.mxu0 0
        %1140 = vmatpush1.bf16.msra.mxu0 0
        %1141 = vmatprep.subr.bf16.mxu0 0
        %1142 = vmatpush1.bf16.msra.mxu0 0
        %1143 = vmatprep.mubr.bf16.mxu0 0
        %1144 = vmatmul.mubr.bf16.gmra.mrb[0].mxu0 %v1082
        %v1145 = vpop.f32.mrb[0].mxu0
        %v1146 = vadd.f32 0.0, %v1145
        %v1147 = vpop.f32.mrb[0].mxu0
        %v1148 = vpop.f32.mrb[0].mxu0
        %v1149 = vadd.f32 0.0, %v1148
        %v1150 = vpop.f32.mrb[0].mxu0
        %1151 = vmatprep.mubr.bf16.mxu0 0
        %1152 = vmatmul.mubr.bf16.gmra.mrb[0].mxu0 %v1085
        %v1153 = vpop.f32.mrb[0].mxu0
        %v1154 = vadd.f32 0.0, %v1153
        %v1155 = vpop.f32.mrb[0].mxu0
        %v1156 = vpop.f32.mrb[0].mxu0
        %v1157 = vadd.f32 0.0, %v1156
        %v1158 = vpop.f32.mrb[0].mxu0
        %1159 = vmatprep.mubr.bf16.mxu0 0
        %1160 = vmatmul.mubr.bf16.gmra.mrb[0].mxu0 %v1088
        %v1161 = vpop.f32.mrb[0].mxu0
        %v1162 = vadd.f32 0.0, %v1161
        %v1163 = vpop.f32.mrb[0].mxu0
        %v1164 = vpop.f32.mrb[0].mxu0
        %v1165 = vadd.f32 0.0, %v1164
        %v1166 = vpop.f32.mrb[0].mxu0
        %1167 = vmatprep.mubr.bf16.mxu0 0
        %1168 = vmatmul.mubr.bf16.gmra.mrb[0].mxu0 %v1091
        %v1169 = vpop.f32.mrb[0].mxu0
        %v1170 = vadd.f32 0.0, %v1169
        %v1171 = vpop.f32.mrb[0].mxu0
        %v1172 = vpop.f32.mrb[0].mxu0
        %v1173 = vadd.f32 0.0, %v1172
        %v1174 = vpop.f32.mrb[0].mxu0
        %1175 = vmatprep.mubr.bf16.mxu0 0
        %1176 = vmatmul.mubr.bf16.gmra.mrb[0].mxu0 %v1094
        %v1177 = vpop.f32.mrb[0].mxu0
        %v1178 = vadd.f32 0.0, %v1177
        %v1179 = vpop.f32.mrb[0].mxu0
        %v1180 = vpop.f32.mrb[0].mxu0
        %v1181 = vadd.f32 0.0, %v1180
        %v1182 = vpop.f32.mrb[0].mxu0
        %1183 = vmatprep.mubr.bf16.mxu0 0
        %1184 = vmatmul.mubr.bf16.gmra.mrb[0].mxu0 %v1097
        %v1185 = vpop.f32.mrb[0].mxu0
        %v1186 = vadd.f32 0.0, %v1185
        %v1187 = vpop.f32.mrb[0].mxu0
        %v1188 = vpop.f32.mrb[0].mxu0
        %v1189 = vadd.f32 0.0, %v1188
        %v1190 = vpop.f32.mrb[0].mxu0
        %1191 = vmatprep.mubr.bf16.mxu0 0
        %1192 = vmatmul.mubr.bf16.gmra.mrb[0].mxu0 %v1100
        %v1193 = vpop.f32.mrb[0].mxu0
        %v1194 = vadd.f32 0.0, %v1193
        %v1195 = vpop.f32.mrb[0].mxu0
        %v1196 = vpop.f32.mrb[0].mxu0
        %v1197 = vadd.f32 0.0, %v1196
        %v1198 = vpop.f32.mrb[0].mxu0
        %1199 = vmatprep.mubr.bf16.mxu0 0
        %1200 = vmatmul.mubr.bf16.gmra.mrb[0].mxu0 %v1103
        %v1201 = vpop.f32.mrb[0].mxu0
        %v1202 = vadd.f32 0.0, %v1201
        %v1203 = vpop.f32.mrb[0].mxu0
        %v1204 = vpop.f32.mrb[0].mxu0
        %v1205 = vadd.f32 0.0, %v1204
        %v1206 = vpop.f32.mrb[0].mxu0
        %1207 = vmatprep.mubr.bf16.mxu0 0
        %1208 = vmatmul.mubr.bf16.gmra.mrb[0].mxu0 %v1106
        %v1209 = vpop.f32.mrb[0].mxu0
        %v1210 = vadd.f32 0.0, %v1209
        %v1211 = vpop.f32.mrb[0].mxu0
        %v1212 = vpop.f32.mrb[0].mxu0
        %v1213 = vadd.f32 0.0, %v1212
        %v1214 = vpop.f32.mrb[0].mxu0
        %1215 = vdwg.mxu0
        %v1221 = vunpack.c.l.b16 %v1029
        %v1222 = vunpack.c.l.b16 %v1030
        %v1223 = vunpack.c.l.b16 %v1031
        %v1224 = vunpack.c.l.b16 %v1032
        %v1225 = vunpack.c.l.b16 %v1033
        %v1226 = vpack.c.b16 %v1222, %v1221
        %v1227 = vpack.c.b16 %v1224, %v1223
        %v1228 = vpack.c.b16 %v1225, %v1225
        %v1232 = vsel %vm405, %v1020, 0
        %v1235 = vsel %vm405, %v1021, 0
        %v1238 = vsel %vm405, %v1022, 0
        %v1241 = vsel %vm405, %v1023, 0
        %v1244 = vsel %vm405, %v1024, 0
        %v1247 = vsel %vm405, %v1025, 0
        %v1250 = vsel %vm405, %v1026, 0
        %v1253 = vsel %vm405, %v1027, 0
        %v1256 = vsel %vm405, %v1028, 0
        %v1259 = vand.u32 %v1228, %v435
        %1261 = vmatprep.subr.bf16.mxu0 0
        %1262 = vmatpush1.bf16.msra.mxu0 %v1226
        %1263 = vmatprep.subr.bf16.mxu0 0
        %1264 = vmatpush1.bf16.msra.mxu0 %v1227
        %1265 = vmatprep.subr.bf16.mxu0 0
        %1266 = vmatpush1.bf16.msra.mxu0 %v1259
        %1267 = vmatprep.subr.bf16.mxu0 0
        %1268 = vmatpush1.bf16.msra.mxu0 0
        %1269 = vmatprep.subr.bf16.mxu0 0
        %1270 = vmatpush1.bf16.msra.mxu0 0
        %1271 = vmatprep.subr.bf16.mxu0 0
        %1272 = vmatpush1.bf16.msra.mxu0 0
        %1273 = vmatprep.subr.bf16.mxu0 0
        %1274 = vmatpush1.bf16.msra.mxu0 0
        %1275 = vmatprep.subr.bf16.mxu0 0
        %1276 = vmatpush1.bf16.msra.mxu0 0
        %1277 = vmatprep.subr.bf16.mxu0 0
        %1278 = vmatpush1.bf16.msra.mxu0 0
        %1279 = vmatprep.subr.bf16.mxu0 0
        %1280 = vmatpush1.bf16.msra.mxu0 0
        %1281 = vmatprep.subr.bf16.mxu0 0
        %1282 = vmatpush1.bf16.msra.mxu0 0
        %1283 = vmatprep.subr.bf16.mxu0 0
        %1284 = vmatpush1.bf16.msra.mxu0 0
        %1285 = vmatprep.subr.bf16.mxu0 0
        %1286 = vmatpush1.bf16.msra.mxu0 0
        %1287 = vmatprep.subr.bf16.mxu0 0
        %1288 = vmatpush1.bf16.msra.mxu0 0
        %1289 = vmatprep.subr.bf16.mxu0 0
        %1290 = vmatpush1.bf16.msra.mxu0 0
        %1291 = vmatprep.subr.bf16.mxu0 0
        %1292 = vmatpush1.bf16.msra.mxu0 0
        %1293 = vmatprep.mubr.bf16.mxu0 0
        %1294 = vmatmul.mubr.bf16.gmra.mrb[0].mxu0 %v1232
        %v1295 = vpop.f32.mrb[0].mxu0
        %v1296 = vadd.f32 %v1146, %v1295
        %v1297 = vpop.f32.mrb[0].mxu0
        %v1298 = vpop.f32.mrb[0].mxu0
        %v1299 = vadd.f32 %v1149, %v1298
        %v1300 = vpop.f32.mrb[0].mxu0
        %1301 = vmatprep.mubr.bf16.mxu0 0
        %1302 = vmatmul.mubr.bf16.gmra.mrb[0].mxu0 %v1235
        %v1303 = vpop.f32.mrb[0].mxu0
        %v1304 = vadd.f32 %v1154, %v1303
        %v1305 = vpop.f32.mrb[0].mxu0
        %v1306 = vpop.f32.mrb[0].mxu0
        %v1307 = vadd.f32 %v1157, %v1306
        %v1308 = vpop.f32.mrb[0].mxu0
        %1309 = vmatprep.mubr.bf16.mxu0 0
        %1310 = vmatmul.mubr.bf16.gmra.mrb[0].mxu0 %v1238
        %v1311 = vpop.f32.mrb[0].mxu0
        %v1312 = vadd.f32 %v1162, %v1311
        %v1313 = vpop.f32.mrb[0].mxu0
        %v1314 = vpop.f32.mrb[0].mxu0
        %v1315 = vadd.f32 %v1165, %v1314
        %v1316 = vpop.f32.mrb[0].mxu0
        %1317 = vmatprep.mubr.bf16.mxu0 0
        %1318 = vmatmul.mubr.bf16.gmra.mrb[0].mxu0 %v1241
        %v1319 = vpop.f32.mrb[0].mxu0
        %v1320 = vadd.f32 %v1170, %v1319
        %v1321 = vpop.f32.mrb[0].mxu0
        %v1322 = vpop.f32.mrb[0].mxu0
        %v1323 = vadd.f32 %v1173, %v1322
        %v1324 = vpop.f32.mrb[0].mxu0
        %1325 = vmatprep.mubr.bf16.mxu0 0
        %1326 = vmatmul.mubr.bf16.gmra.mrb[0].mxu0 %v1244
        %v1327 = vpop.f32.mrb[0].mxu0
        %v1328 = vadd.f32 %v1178, %v1327
        %v1329 = vpop.f32.mrb[0].mxu0
        %v1330 = vpop.f32.mrb[0].mxu0
        %v1331 = vadd.f32 %v1181, %v1330
        %v1332 = vpop.f32.mrb[0].mxu0
        %1333 = vmatprep.mubr.bf16.mxu0 0
        %1334 = vmatmul.mubr.bf16.gmra.mrb[0].mxu0 %v1247
        %v1335 = vpop.f32.mrb[0].mxu0
        %v1336 = vadd.f32 %v1186, %v1335
        %v1337 = vpop.f32.mrb[0].mxu0
        %v1338 = vpop.f32.mrb[0].mxu0
        %v1339 = vadd.f32 %v1189, %v1338
        %v1340 = vpop.f32.mrb[0].mxu0
        %1341 = vmatprep.mubr.bf16.mxu0 0
        %1342 = vmatmul.mubr.bf16.gmra.mrb[0].mxu0 %v1250
        %v1343 = vpop.f32.mrb[0].mxu0
        %v1344 = vadd.f32 %v1194, %v1343
        %v1345 = vpop.f32.mrb[0].mxu0
        %v1346 = vpop.f32.mrb[0].mxu0
        %v1347 = vadd.f32 %v1197, %v1346
        %v1348 = vpop.f32.mrb[0].mxu0
        %1349 = vmatprep.mubr.bf16.mxu0 0
        %1350 = vmatmul.mubr.bf16.gmra.mrb[0].mxu0 %v1253
        %v1351 = vpop.f32.mrb[0].mxu0
        %v1352 = vadd.f32 %v1202, %v1351
        %v1353 = vpop.f32.mrb[0].mxu0
        %v1354 = vpop.f32.mrb[0].mxu0
        %v1355 = vadd.f32 %v1205, %v1354
        %v1356 = vpop.f32.mrb[0].mxu0
        %1357 = vmatprep.mubr.bf16.mxu0 0
        %1358 = vmatmul.mubr.bf16.gmra.mrb[0].mxu0 %v1256
        %v1359 = vpop.f32.mrb[0].mxu0
        %v1360 = vadd.f32 %v1210, %v1359
        %v1361 = vpop.f32.mrb[0].mxu0
        %v1362 = vpop.f32.mrb[0].mxu0
        %v1363 = vadd.f32 %v1213, %v1362
        %v1364 = vpop.f32.mrb[0].mxu0
        %1365 = vdwg.mxu0
        %1366 = vst [vmem:[%s256] sm:$0xff] %v1296
        %1367 = vst [vmem:[%s256 + $0x8] sm:$0xff] %v1299
        %1368 = vst [vmem:[%s256 + $0x10] sm:$0xff] %v1304
        %1369 = vst [vmem:[%s256 + $0x18] sm:$0xff] %v1307
        %1370 = vst [vmem:[%s256 + $0x20] sm:$0xff] %v1312
        %1371 = vst [vmem:[%s256 + $0x28] sm:$0xff] %v1315
        %1372 = vst [vmem:[%s256 + $0x30] sm:$0xff] %v1320
        %1373 = vst [vmem:[%s256 + $0x38] sm:$0xff] %v1323
        %1374 = vst [vmem:[%s256 + $0x40] sm:$0xff] %v1328
        %1375 = vst [vmem:[%s256 + $0x48] sm:$0xff] %v1331
        %1376 = vst [vmem:[%s256 + $0x50] sm:$0xff] %v1336
        %1377 = vst [vmem:[%s256 + $0x58] sm:$0xff] %v1339
        %1378 = vst [vmem:[%s256 + $0x60] sm:$0xff] %v1344
        %1379 = vst [vmem:[%s256 + $0x68] sm:$0xff] %v1347
        %1380 = vst [vmem:[%s256 + $0x70] sm:$0xff] %v1352
        %1381 = vst [vmem:[%s256 + $0x78] sm:$0xff] %v1355
        %1382 = vst [vmem:[%s256 + $0x80] sm:$0xff] %v1360
        %1383 = vst [vmem:[%s256 + $0x88] sm:$0xff] %v1363
        %s1384 = sand.u32 %s142, 1
        %s1385 = scalar_lea.sflag [#allocation3], %s1384
        %s1386 = sand.u32 %s142, 1
        %s1387 = smul.addr %s1386, 16
        %s1388 = scalar_lea.vmem [#allocation2], %s1387
        %s1389 = sand.u32 %s168, 1
        %s1390 = scalar_lea.sflag [#allocation5], %s1389
        %s1391 = sand.u32 %s168, 1
        %s1392 = smul.addr %s1391, 144
        %s1393 = scalar_lea.vmem [#allocation4], %s1392
        // Predicated region
        $region41: #{tpu_custom_call.1} parent=39 // pred_check
          %p1394 = pneg %p152
        $region42: #{tpu_custom_call.1} parent=39 // pred_check_branch
          %1396 = sbr.rel (%p1394) target = $region44
        $region43: #{tpu_custom_call.1} parent=39 // pred_region
          %s1397 = smul.u32 2, %s24
          %s1399 = ssub.s32 256, 256
          %1400 = vsyncadd %s1385, %s1399
          %s1401 = smul.addr %s1397, 128
          %s1402 = scalar_lea.hbm %s5, %s1401
          %s1403 = sshll.u32 %s1388, 4
          %s1404 = int_to_ptr.vmem [resolvable:$true] %s1403
          %1409 = dma.vmem_to_hbm [thread:$0]  %s1404, 256, %s1402, %s1385, 128, 128, 8
        $region44: #{tpu_custom_call.1} parent=39 // pred_fallthru
          _
        // Predicated region
        $region45: #{tpu_custom_call.1} parent=39 // pred_check
          %p1410 = pneg %p178
        $region46: #{tpu_custom_call.1} parent=39 // pred_check_branch
          %1412 = sbr.rel (%p1410) target = $region48
        $region47: #{tpu_custom_call.1} parent=39 // pred_region
          %s1413 = smul.u32 18, %s24
          %s1415 = ssub.s32 2304, 2304
          %1416 = vsyncadd %s1390, %s1415
          %s1417 = smul.addr %s1413, 128
          %s1418 = scalar_lea.hbm %s6, %s1417
          %s1419 = sshll.u32 %s1393, 4
          %s1420 = int_to_ptr.vmem [resolvable:$true] %s1419
          %1425 = dma.vmem_to_hbm [thread:$0]  %s1420, 2304, %s1418, %s1390, 128, 128, 8
        $region48: #{tpu_custom_call.1} parent=39 // pred_fallthru
          _
      $region40: #{tpu_custom_call.1} parent=5 // pred_fallthru
        _
      %p1426 = scmp.le.s32.totalorder 2, %s19
      // Predicated region
      $region49: #{tpu_custom_call.1} parent=5 // pred_check
        %p1427 = pneg %p1426
      $region50: #{tpu_custom_call.1} parent=5 // pred_check_branch
        %1429 = sbr.rel (%p1427) target = $region52
      $region51: #{tpu_custom_call.1} parent=5 // pred_region
        %s1430 = ssub.s32 %s19, 2
        // Predicated region
        $region53: #{tpu_custom_call.1} parent=51 // pred_check
          %p1431 = pneg %p158
        $region54: #{tpu_custom_call.1} parent=51 // pred_check_branch
          %1433 = sbr.rel (%p1431) target = $region56
        $region55: #{tpu_custom_call.1} parent=51 // pred_region
          %s1434 = sand.u32 %s143, 1
          %s1435 = scalar_lea.sflag [#allocation3], %s1434
          %s1436 = sand.u32 %s143, 1
          %s1437 = smul.addr %s1436, 16
          %s1438 = scalar_lea.vmem [#allocation2], %s1437
          %1439 = dma.done %s1435, 256
        $region56: #{tpu_custom_call.1} parent=51 // pred_fallthru
          _
        // Predicated region
        $region57: #{tpu_custom_call.1} parent=51 // pred_check
          %p1440 = pneg %p184
        $region58: #{tpu_custom_call.1} parent=51 // pred_check_branch
          %1442 = sbr.rel (%p1440) target = $region60
        $region59: #{tpu_custom_call.1} parent=51 // pred_region
          %s1443 = sand.u32 %s169, 1
          %s1444 = scalar_lea.sflag [#allocation5], %s1443
          %s1445 = sand.u32 %s169, 1
          %s1446 = smul.addr %s1445, 144
          %s1447 = scalar_lea.vmem [#allocation4], %s1446
          %1448 = dma.done %s1444, 2304
        $region60: #{tpu_custom_call.1} parent=51 // pred_fallthru
          _
      $region52: #{tpu_custom_call.1} parent=5 // pred_fallthru
        _
    $region6: #{tpu_custom_call.1} parent=1 // loop_footer
      %s23 = sadd.s32 1, %s19
    $region7: #{tpu_custom_call.1} parent=1 // loop_footer_branch
      %18 = sbr.rel target = $region3
    $region8: #{tpu_custom_call.1} parent=1 // loop_exit
      _
    %1449 = vsyncpa [#allocation3], 1
    %s1450 = scalar_lea.sflag [#allocation3], 1
    %1451 = vsyncpa %s1450, 1
    %1452 = vsyncpa [#allocation5], 1
    %s1453 = scalar_lea.sflag [#allocation5], 1
    %1454 = vsyncpa %s1453, 1

</llo_original>
